<compile_context>
chip_gen: v7x
topology: tpu7x:2x2x1
jax: 0.10.0
libtpu: 0.0.40
codegen_flags: <defaults>
</compile_context>

<pallas_src>
import jax
import jax.numpy as jnp
from jax.experimental import pallas as pl
from jax.experimental.pallas import tpu as pltpu

KS = 3                    # conv kernel size (kernel_size=3 branch)
TAPS1 = KS * KS           # 9  conv1 taps
TAPS = TAPS1 * TAPS1      # 81 patch columns (conv2 tap x conv1 tap)
C1 = 32                   # conv1 out channels
C2 = 64                   # conv2 out channels
FC1_N = 32
FC2_N = 10
N_PAD = 128               # lane-dense padding for fc2/fc3/output


# ----------------------------------------------------------------------------
# The single fused kernel: conv1 -> conv2 -> fc1 -> fc2 -> fc3 (one batch tile).
# ----------------------------------------------------------------------------
def _cnn_kernel(p1_ref, wa_ref, wb_ref, wc_ref, wd_ref, out_ref, h2_ref):
    """Shapes (Bt = batch tile, R = 36 conv2 output positions):
      p1_ref : (R*Bt, 81) bf16  conv1 patches at all 9 conv2-tap shifts,
                                rows ordered (spatial r, sample b)
      wa_ref : (82, 288)  bf16  [ kron(I9, W1) ; tiled conv1 bias ]
      wb_ref : (289, 64)  bf16  [ stacked conv2 weight ; conv2 bias ]
      wc_ref : (2305, 32) bf16  [ fc1 weight (rows = r*64+c, NCHW flatten
                                  folded in) ; fc1 bias ]
      wd_ref : (162, 128) bf16  [ fc3 weight padded ; fc2 weight padded ;
                                  fc2 bias ; fc3 bias ]
      out_ref: (Bt, 128)  f32   lane-dense logits (cols >= target_dims are 0)
      h2_ref : (Bt, R*64) bf16  VMEM scratch = flattened conv2 activations
    """
    f32 = jnp.float32
    bf16 = jnp.bfloat16
    bt = out_ref.shape[0]
    r_tot = p1_ref.shape[0] // bt                     # 36

    # conv1 (+ReLU) for all 9 conv2 taps at once via the block-diagonal
    # kron(I9, W1) weight: one (R*Bt, 81) x (81, 288) matmul.
    w1bd = wa_ref[0:TAPS, :]
    b1 = wa_ref[TAPS:TAPS + 1, :].astype(f32)
    h1 = jnp.maximum(
        jnp.dot(p1_ref[...], w1bd, preferred_element_type=f32) + b1, 0.0)

    # conv2 (+ReLU): one (R*Bt, 288) x (288, 64) matmul.
    w2s = wb_ref[0:TAPS1 * C1, :]
    b2 = wb_ref[TAPS1 * C1:TAPS1 * C1 + 1, :].astype(f32)
    h2 = jnp.maximum(
        jnp.dot(h1.astype(bf16), w2s, preferred_element_type=f32) + b2,
        0.0).astype(bf16)

    # Scatter the (r, b)-ordered conv2 rows into (Bt, R*64): column r*64+c
    # holds (spatial r, channel c); the fc1 weight below is packed to match,
    # which folds torch.flatten's NCHW order. 36 static column stores.
    for r in range(r_tot):                            # static unroll (36)
        h2_ref[:, r * C2:(r + 1) * C2] = h2[r * bt:(r + 1) * bt, :]

    # fc1 (+ReLU): ONE (Bt, 2304) x (2304, 32) matmul (no micro-matmul chain).
    wfc1 = wc_ref[0:r_tot * C2, :]
    bfc1 = wc_ref[r_tot * C2:r_tot * C2 + 1, :].astype(f32)
    h3 = jnp.maximum(
        jnp.dot(h2_ref[...], wfc1, preferred_element_type=f32) + bfc1, 0.0)

    # fc2 (+ReLU) and fc3, both zero-padded to lane-dense N = 128.
    wfc3 = wd_ref[0:N_PAD, :]
    wfc2 = wd_ref[N_PAD:N_PAD + FC1_N, :]
    bfc2 = wd_ref[N_PAD + FC1_N:N_PAD + FC1_N + 1, :].astype(f32)
    bfc3 = wd_ref[N_PAD + FC1_N + 1:N_PAD + FC1_N + 2, :].astype(f32)
    h4 = jnp.maximum(
        jnp.dot(h3.astype(bf16), wfc2, preferred_element_type=f32) + bfc2, 0.0)
    out_ref[...] = (
        jnp.dot(h4.astype(bf16), wfc3, preferred_element_type=f32) + bfc3
    ).astype(out_ref.dtype)


# ----------------------------------------------------------------------------
# One-time parameter re-layout: PyTorch layouts -> 4 packed bf16 buffers.
# ----------------------------------------------------------------------------
def prep_params(params):
    f32, bf16 = jnp.float32, jnp.bfloat16
    target_dims = params["fc3_w"].shape[0]

    # conv1: block-diagonal kron(I9, W1), row = t2*9+t1, col = t2*32+c1.
    w1 = params["conv1_w"].astype(f32)                         # (32, 1, 3, 3)
    w1_mat = w1.reshape(C1, TAPS1).T                           # (9, 32)
    w1bd = jnp.kron(jnp.eye(TAPS1, dtype=f32), w1_mat)         # (81, 288)
    b1row = jnp.tile(params["conv1_b"].astype(f32), TAPS1).reshape(1, TAPS1 * C1)
    wa = jnp.concatenate([w1bd, b1row], axis=0).astype(bf16)   # (82, 288)

    # conv2: stacked per-tap weight, row = t2*32+c1 (matches h1 columns).
    w2 = params["conv2_w"].astype(f32)                         # (64, 32, 3, 3)
    w2s = jnp.transpose(w2, (2, 3, 1, 0)).reshape(TAPS1 * C1, C2)
    b2row = params["conv2_b"].astype(f32).reshape(1, C2)
    wb = jnp.concatenate([w2s, b2row], axis=0).astype(bf16)    # (289, 64)

    # fc1: torch flatten index is c*36 + r; our scratch column is r*64 + c.
    # wfc1[r*64 + c, n] = fc1_w[n, c*36 + r].
    r_tot = params["fc1_w"].shape[1] // C2                     # 36
    wfc1 = (params["fc1_w"].astype(f32)
            .reshape(FC1_N, C2, r_tot).transpose(2, 1, 0)
            .reshape(r_tot * C2, FC1_N))
    bfc1row = params["fc1_b"].astype(f32).reshape(1, FC1_N)
    wc = jnp.concatenate([wfc1, bfc1row], axis=0).astype(bf16)  # (2305, 32)

    # fc2/fc3 padded to lane-dense N=128, packed into one 128-wide buffer:
    # [ wfc3 (128,128) ; wfc2 (32,128) ; bfc2 (1,128) ; bfc3 (1,128) ].
    wfc2_pad = jnp.zeros((FC1_N, N_PAD), f32).at[:, :FC2_N].set(
        params["fc2_w"].astype(f32).T)
    bfc2_pad = jnp.zeros((1, N_PAD), f32).at[0, :FC2_N].set(
        params["fc2_b"].astype(f32))
    wfc3_pad = jnp.zeros((N_PAD, N_PAD), f32).at[:FC2_N, :target_dims].set(
        params["fc3_w"].astype(f32).T)
    bfc3_pad = jnp.zeros((1, N_PAD), f32).at[0, :target_dims].set(
        params["fc3_b"].astype(f32))
    wd = jnp.concatenate([wfc3_pad, wfc2_pad, bfc2_pad, bfc3_pad],
                         axis=0).astype(bf16)                   # (162, 128)
    return wa, wb, wc, wd


def _conv_patches(x):
    """conv1 im2col patches at all 9 conv2-tap-shifted positions.

    x: (B, H, W, 1) -> (B, Ho, Wo, 81), col = (kh2*3+kw2)*9 + (kh1*3+kw1).
    """
    B, H, W, _ = x.shape
    Ho, Wo = H - 2 * (KS - 1), W - 2 * (KS - 1)
    xs = x[..., 0]
    cols = []
    for kh2 in range(KS):
        for kw2 in range(KS):
            for kh1 in range(KS):
                for kw1 in range(KS):
                    dy, dx = kh2 + kh1, kw2 + kw1
                    cols.append(xs[:, dy:dy + Ho, dx:dx + Wo])
    return jnp.stack(cols, axis=-1)                   # (B, Ho, Wo, 81)


def make_cnn_forward(params, batch_tile=16):
    """Returns a jitted forward(x_nhwc) -> (B, target_dims)."""
    wa, wb, wc, wd = prep_params(params)
    target_dims = params["fc3_w"].shape[0]

    def forward(x):
        B, H, W, _ = x.shape
        Ho, Wo = H - 2 * (KS - 1), W - 2 * (KS - 1)
        R = Ho * Wo
        # Batch tile: full batch when small; otherwise a sublane-aligned tile.
        bt = B if B <= batch_tile else max(8, (batch_tile // 8) * 8)
        Bp = ((B + bt - 1) // bt) * bt
        if Bp != B:
            x = jnp.pad(x, ((0, Bp - B), (0, 0), (0, 0), (0, 0)))
        nt = Bp // bt

        # Patches in bf16, laid out (tile, r*bt + b, 81): contiguous per tile.
        p = _conv_patches(x).astype(jnp.bfloat16)               # (Bp,Ho,Wo,81)
        p1 = (p.reshape(nt, bt, R, TAPS)
               .transpose(0, 2, 1, 3)
               .reshape(nt, R * bt, TAPS))

        out_padded = pl.pallas_call(
            _cnn_kernel,
            out_shape=jax.ShapeDtypeStruct((Bp, N_PAD), jnp.float32),
            grid=(nt,),
            in_specs=[
                pl.BlockSpec((None, R * bt, TAPS), lambda i: (i, 0, 0)),
                pl.BlockSpec(wa.shape, lambda i: (0, 0)),
                pl.BlockSpec(wb.shape, lambda i: (0, 0)),
                pl.BlockSpec(wc.shape, lambda i: (0, 0)),
                pl.BlockSpec(wd.shape, lambda i: (0, 0)),
            ],
            out_specs=pl.BlockSpec((bt, N_PAD), lambda i: (i, 0)),
            scratch_shapes=[pltpu.VMEM((bt, R * C2), jnp.bfloat16)],
            compiler_params=pltpu.CompilerParams(
                dimension_semantics=("parallel",)),
        )(p1, wa, wb, wc, wd)
        return out_padded[:B, :target_dims]

    return jax.jit(forward)


# ----------------------------------------------------------------------------
# Deterministic init (xavier-normal-like weights, zero biases), matching the
# kernel_size=3 branch of the PyTorch module.
# NOTE: nn.Dropout(0.2) is constructed in __init__ but never used in forward().
# ----------------------------------------------------------------------------
def init_params(key, target_dims):
    def xavier_normal(k, shape, fan_in, fan_out):
        std = (2.0 / (fan_in + fan_out)) ** 0.5
        return std * jax.random.normal(k, shape, dtype=jnp.float32)

    keys = jax.random.split(key, 5)
    k = KS
    return {
        "conv1_w": xavier_normal(keys[0], (32, 1, k, k), 1 * k * k, 32 * k * k),
        "conv1_b": jnp.zeros((32,), jnp.float32),
        "conv2_w": xavier_normal(keys[1], (64, 32, k, k), 32 * k * k, 64 * k * k),
        "conv2_b": jnp.zeros((64,), jnp.float32),
        "fc1_w": xavier_normal(keys[2], (32, 6 * 6 * 64), 6 * 6 * 64, 32),
        "fc1_b": jnp.zeros((32,), jnp.float32),
        "fc2_w": xavier_normal(keys[3], (10, 32), 32, 10),
        "fc2_b": jnp.zeros((10,), jnp.float32),
        "fc3_w": xavier_normal(keys[4], (target_dims, 10), 10, target_dims),
        "fc3_b": jnp.zeros((target_dims,), jnp.float32),
    }


# ----------------------------------------------------------------------------
# Pure-JAX reference (mirrors the PyTorch forward) for a correctness check.
# ----------------------------------------------------------------------------
def reference_forward(x, params):
    hp = jax.lax.Precision.HIGHEST
    dn = ("NCHW", "OIHW", "NCHW")
    xn = jnp.transpose(x, (0, 3, 1, 2))                       # NHWC -> NCHW
    y = jax.lax.conv_general_dilated(xn, params["conv1_w"], (1, 1), "VALID",
                                     dimension_numbers=dn, precision=hp)
    y = jnp.maximum(y + params["conv1_b"][None, :, None, None], 0.0)
    y = jax.lax.conv_general_dilated(y, params["conv2_w"], (1, 1), "VALID",
                                     dimension_numbers=dn, precision=hp)
    y = jnp.maximum(y + params["conv2_b"][None, :, None, None], 0.0)
    flat = y.reshape(y.shape[0], -1)                          # torch.flatten(x,1)
    h = jnp.maximum(jnp.matmul(flat, params["fc1_w"].T, precision=hp)
                    + params["fc1_b"], 0.0)
    h = jnp.maximum(jnp.matmul(h, params["fc2_w"].T, precision=hp)
                    + params["fc2_b"], 0.0)
    return jnp.matmul(h, params["fc3_w"].T, precision=hp) + params["fc3_b"]


if __name__ == "__main__":
    key = jax.random.PRNGKey(0)
    k_x, k_p, k_x2 = jax.random.split(key, 3)

    target_dims = 5
    params = init_params(k_p, target_dims)
    forward = make_cnn_forward(params)

    # fc1 expects 6*6*64 -> two valid 3x3 convs -> input spatial 10x10, 1 ch.
    # bf16 MXU operands (f32 accumulation) dominate the tolerance below.
    x = jax.random.normal(k_x, (2, 10, 10, 1), dtype=jnp.float32)       # NHWC
    out = jax.block_until_ready(forward(x))
    assert out.shape == (2, target_dims), out.shape
    ref = jax.block_until_ready(reference_forward(x, params))
    err = float(jnp.max(jnp.abs(out - ref)))
    assert err < 4e-2, f"fused kernel mismatch vs reference (max abs err = {err})"

    # Larger batch: exercises the multi-step parallel grid / pipelined path.
    x2 = jax.random.normal(k_x2, (32, 10, 10, 1), dtype=jnp.float32)
    out2 = jax.block_until_ready(forward(x2))
    assert out2.shape == (32, target_dims), out2.shape
    ref2 = jax.block_until_ready(reference_forward(x2, params))
    err2 = float(jnp.max(jnp.abs(out2 - ref2)))
    assert err2 < 4e-2, f"batched mismatch vs reference (max abs err = {err2})"

    print("KERNEL_OK")
</pallas_src>

<mosaic_0001>
module attributes {stable_mosaic.version = 11 : i64} {
  func.func @_cnn_kernel(%arg0: i32, %arg1: memref<1x72x81xbf16, #tpu.memory_space<vmem>>, %arg2: memref<82x288xbf16, #tpu.memory_space<vmem>>, %arg3: memref<289x64xbf16, #tpu.memory_space<vmem>>, %arg4: memref<2305x32xbf16, #tpu.memory_space<vmem>>, %arg5: memref<162x128xbf16, #tpu.memory_space<vmem>>, %arg6: memref<2x128xf32, #tpu.memory_space<vmem>>, %arg7: memref<2x2304xbf16, #tpu.memory_space<vmem>>) attributes {dimension_semantics = [#tpu.dimension_semantics<parallel>], iteration_bounds = array<i64: 1>, scalar_prefetch = 0 : i64, scratch_operands = 1 : i64, tpu.core_type = #tpu.core_type<tc>, window_params = [{transform_indices = @transform_0, window_bounds = array<i64: 1, 72, 81>}, {pipeline_mode = #tpu.pipeline_mode<synchronous>, transform_indices = @transform_1, window_bounds = array<i64: 82, 288>}, {pipeline_mode = #tpu.pipeline_mode<synchronous>, transform_indices = @transform_2, window_bounds = array<i64: 289, 64>}, {pipeline_mode = #tpu.pipeline_mode<synchronous>, transform_indices = @transform_3, window_bounds = array<i64: 2305, 32>}, {pipeline_mode = #tpu.pipeline_mode<synchronous>, transform_indices = @transform_4, window_bounds = array<i64: 162, 128>}, {transform_indices = @transform_5, window_bounds = array<i64: 2, 128>}]} {
    %c0 = arith.constant 0 : index
    %c0_0 = arith.constant 0 : index
    %0 = vector.load %arg2[%c0, %c0_0] : memref<82x288xbf16, #tpu.memory_space<vmem>>, vector<81x288xbf16>
    %c81 = arith.constant 81 : index
    %c0_1 = arith.constant 0 : index
    %1 = vector.load %arg2[%c81, %c0_1] : memref<82x288xbf16, #tpu.memory_space<vmem>>, vector<1x288xbf16>
    %2 = arith.extf %1 : vector<1x288xbf16> to vector<1x288xf32>
    %c0_2 = arith.constant 0 : index
    %c0_3 = arith.constant 0 : index
    %c0_4 = arith.constant 0 : index
    %3 = vector.load %arg1[%c0_2, %c0_3, %c0_4] : memref<1x72x81xbf16, #tpu.memory_space<vmem>>, vector<1x72x81xbf16>
    %4 = vector.shape_cast %3 : vector<1x72x81xbf16> to vector<72x81xbf16>
    %cst = arith.constant dense<0.000000e+00> : vector<72x288xf32>
    %5 = tpu.matmul %4, %0, %cst {dimension_numbers = #tpu.dot_dimension_numbers<[1], [0], [0], [1], [0, 0, 1, 1], [], []>} : vector<72x81xbf16>, vector<81x288xbf16>, vector<72x288xf32> -> vector<72x288xf32>
    %6 = vector.broadcast %2 : vector<1x288xf32> to vector<72x288xf32>
    %7 = arith.addf %5, %6 : vector<72x288xf32>
    %cst_5 = arith.constant 0.000000e+00 : f32
    %8 = vector.broadcast %cst_5 : f32 to vector<72x288xf32>
    %9 = arith.maximumf %7, %8 : vector<72x288xf32>
    %c0_6 = arith.constant 0 : index
    %c0_7 = arith.constant 0 : index
    %10 = vector.load %arg3[%c0_6, %c0_7] : memref<289x64xbf16, #tpu.memory_space<vmem>>, vector<288x64xbf16>
    %c288 = arith.constant 288 : index
    %c0_8 = arith.constant 0 : index
    %11 = vector.load %arg3[%c288, %c0_8] : memref<289x64xbf16, #tpu.memory_space<vmem>>, vector<1x64xbf16>
    %12 = arith.extf %11 : vector<1x64xbf16> to vector<1x64xf32>
    %13 = arith.truncf %9 : vector<72x288xf32> to vector<72x288xbf16>
    %cst_9 = arith.constant dense<0.000000e+00> : vector<72x64xf32>
    %14 = tpu.matmul %13, %10, %cst_9 {dimension_numbers = #tpu.dot_dimension_numbers<[1], [0], [0], [1], [0, 0, 1, 1], [], []>} : vector<72x288xbf16>, vector<288x64xbf16>, vector<72x64xf32> -> vector<72x64xf32>
    %15 = vector.broadcast %12 : vector<1x64xf32> to vector<72x64xf32>
    %16 = arith.addf %14, %15 : vector<72x64xf32>
    %cst_10 = arith.constant 0.000000e+00 : f32
    %17 = vector.broadcast %cst_10 : f32 to vector<72x64xf32>
    %18 = arith.maximumf %16, %17 : vector<72x64xf32>
    %19 = arith.truncf %18 : vector<72x64xf32> to vector<72x64xbf16>
    %20 = vector.extract_strided_slice %19 {offsets = [0, 0], sizes = [2, 64], strides = [1, 1]} : vector<72x64xbf16> to vector<2x64xbf16>
    %c0_11 = arith.constant 0 : index
    %c0_12 = arith.constant 0 : index
    %21 = vector.load %arg7[%c0_11, %c0_12] : memref<2x2304xbf16, #tpu.memory_space<vmem>>, vector<2x64xbf16>
    tpu.vector_store %arg7[%c0_11, %c0_12], %20 {strides = array<i32>} : memref<2x2304xbf16, #tpu.memory_space<vmem>>, vector<2x64xbf16>,
    %22 = vector.extract_strided_slice %19 {offsets = [2, 0], sizes = [2, 64], strides = [1, 1]} : vector<72x64xbf16> to vector<2x64xbf16>
    %c0_13 = arith.constant 0 : index
    %c64 = arith.constant 64 : index
    %23 = vector.load %arg7[%c0_13, %c64] : memref<2x2304xbf16, #tpu.memory_space<vmem>>, vector<2x64xbf16>
    tpu.vector_store %arg7[%c0_13, %c64], %22 {strides = array<i32>} : memref<2x2304xbf16, #tpu.memory_space<vmem>>, vector<2x64xbf16>,
    %24 = vector.extract_strided_slice %19 {offsets = [4, 0], sizes = [2, 64], strides = [1, 1]} : vector<72x64xbf16> to vector<2x64xbf16>
    %c0_14 = arith.constant 0 : index
    %c128 = arith.constant 128 : index
    %25 = vector.load %arg7[%c0_14, %c128] : memref<2x2304xbf16, #tpu.memory_space<vmem>>, vector<2x64xbf16>
    tpu.vector_store %arg7[%c0_14, %c128], %24 {strides = array<i32>} : memref<2x2304xbf16, #tpu.memory_space<vmem>>, vector<2x64xbf16>,
    %26 = vector.extract_strided_slice %19 {offsets = [6, 0], sizes = [2, 64], strides = [1, 1]} : vector<72x64xbf16> to vector<2x64xbf16>
    %c0_15 = arith.constant 0 : index
    %c192 = arith.constant 192 : index
    %27 = vector.load %arg7[%c0_15, %c192] : memref<2x2304xbf16, #tpu.memory_space<vmem>>, vector<2x64xbf16>
    tpu.vector_store %arg7[%c0_15, %c192], %26 {strides = array<i32>} : memref<2x2304xbf16, #tpu.memory_space<vmem>>, vector<2x64xbf16>,
    %28 = vector.extract_strided_slice %19 {offsets = [8, 0], sizes = [2, 64], strides = [1, 1]} : vector<72x64xbf16> to vector<2x64xbf16>
    %c0_16 = arith.constant 0 : index
    %c256 = arith.constant 256 : index
    %29 = vector.load %arg7[%c0_16, %c256] : memref<2x2304xbf16, #tpu.memory_space<vmem>>, vector<2x64xbf16>
    tpu.vector_store %arg7[%c0_16, %c256], %28 {strides = array<i32>} : memref<2x2304xbf16, #tpu.memory_space<vmem>>, vector<2x64xbf16>,
    %30 = vector.extract_strided_slice %19 {offsets = [10, 0], sizes = [2, 64], strides = [1, 1]} : vector<72x64xbf16> to vector<2x64xbf16>
    %c0_17 = arith.constant 0 : index
    %c320 = arith.constant 320 : index
    %31 = vector.load %arg7[%c0_17, %c320] : memref<2x2304xbf16, #tpu.memory_space<vmem>>, vector<2x64xbf16>
    tpu.vector_store %arg7[%c0_17, %c320], %30 {strides = array<i32>} : memref<2x2304xbf16, #tpu.memory_space<vmem>>, vector<2x64xbf16>,
    %32 = vector.extract_strided_slice %19 {offsets = [12, 0], sizes = [2, 64], strides = [1, 1]} : vector<72x64xbf16> to vector<2x64xbf16>
    %c0_18 = arith.constant 0 : index
    %c384 = arith.constant 384 : index
    %33 = vector.load %arg7[%c0_18, %c384] : memref<2x2304xbf16, #tpu.memory_space<vmem>>, vector<2x64xbf16>
    tpu.vector_store %arg7[%c0_18, %c384], %32 {strides = array<i32>} : memref<2x2304xbf16, #tpu.memory_space<vmem>>, vector<2x64xbf16>,
    %34 = vector.extract_strided_slice %19 {offsets = [14, 0], sizes = [2, 64], strides = [1, 1]} : vector<72x64xbf16> to vector<2x64xbf16>
    %c0_19 = arith.constant 0 : index
    %c448 = arith.constant 448 : index
    %35 = vector.load %arg7[%c0_19, %c448] : memref<2x2304xbf16, #tpu.memory_space<vmem>>, vector<2x64xbf16>
    tpu.vector_store %arg7[%c0_19, %c448], %34 {strides = array<i32>} : memref<2x2304xbf16, #tpu.memory_space<vmem>>, vector<2x64xbf16>,
    %36 = vector.extract_strided_slice %19 {offsets = [16, 0], sizes = [2, 64], strides = [1, 1]} : vector<72x64xbf16> to vector<2x64xbf16>
    %c0_20 = arith.constant 0 : index
    %c512 = arith.constant 512 : index
    %37 = vector.load %arg7[%c0_20, %c512] : memref<2x2304xbf16, #tpu.memory_space<vmem>>, vector<2x64xbf16>
    tpu.vector_store %arg7[%c0_20, %c512], %36 {strides = array<i32>} : memref<2x2304xbf16, #tpu.memory_space<vmem>>, vector<2x64xbf16>,
    %38 = vector.extract_strided_slice %19 {offsets = [18, 0], sizes = [2, 64], strides = [1, 1]} : vector<72x64xbf16> to vector<2x64xbf16>
    %c0_21 = arith.constant 0 : index
    %c576 = arith.constant 576 : index
    %39 = vector.load %arg7[%c0_21, %c576] : memref<2x2304xbf16, #tpu.memory_space<vmem>>, vector<2x64xbf16>
    tpu.vector_store %arg7[%c0_21, %c576], %38 {strides = array<i32>} : memref<2x2304xbf16, #tpu.memory_space<vmem>>, vector<2x64xbf16>,
    %40 = vector.extract_strided_slice %19 {offsets = [20, 0], sizes = [2, 64], strides = [1, 1]} : vector<72x64xbf16> to vector<2x64xbf16>
    %c0_22 = arith.constant 0 : index
    %c640 = arith.constant 640 : index
    %41 = vector.load %arg7[%c0_22, %c640] : memref<2x2304xbf16, #tpu.memory_space<vmem>>, vector<2x64xbf16>
    tpu.vector_store %arg7[%c0_22, %c640], %40 {strides = array<i32>} : memref<2x2304xbf16, #tpu.memory_space<vmem>>, vector<2x64xbf16>,
    %42 = vector.extract_strided_slice %19 {offsets = [22, 0], sizes = [2, 64], strides = [1, 1]} : vector<72x64xbf16> to vector<2x64xbf16>
    %c0_23 = arith.constant 0 : index
    %c704 = arith.constant 704 : index
    %43 = vector.load %arg7[%c0_23, %c704] : memref<2x2304xbf16, #tpu.memory_space<vmem>>, vector<2x64xbf16>
    tpu.vector_store %arg7[%c0_23, %c704], %42 {strides = array<i32>} : memref<2x2304xbf16, #tpu.memory_space<vmem>>, vector<2x64xbf16>,
    %44 = vector.extract_strided_slice %19 {offsets = [24, 0], sizes = [2, 64], strides = [1, 1]} : vector<72x64xbf16> to vector<2x64xbf16>
    %c0_24 = arith.constant 0 : index
    %c768 = arith.constant 768 : index
    %45 = vector.load %arg7[%c0_24, %c768] : memref<2x2304xbf16, #tpu.memory_space<vmem>>, vector<2x64xbf16>
    tpu.vector_store %arg7[%c0_24, %c768], %44 {strides = array<i32>} : memref<2x2304xbf16, #tpu.memory_space<vmem>>, vector<2x64xbf16>,
    %46 = vector.extract_strided_slice %19 {offsets = [26, 0], sizes = [2, 64], strides = [1, 1]} : vector<72x64xbf16> to vector<2x64xbf16>
    %c0_25 = arith.constant 0 : index
    %c832 = arith.constant 832 : index
    %47 = vector.load %arg7[%c0_25, %c832] : memref<2x2304xbf16, #tpu.memory_space<vmem>>, vector<2x64xbf16>
    tpu.vector_store %arg7[%c0_25, %c832], %46 {strides = array<i32>} : memref<2x2304xbf16, #tpu.memory_space<vmem>>, vector<2x64xbf16>,
    %48 = vector.extract_strided_slice %19 {offsets = [28, 0], sizes = [2, 64], strides = [1, 1]} : vector<72x64xbf16> to vector<2x64xbf16>
    %c0_26 = arith.constant 0 : index
    %c896 = arith.constant 896 : index
    %49 = vector.load %arg7[%c0_26, %c896] : memref<2x2304xbf16, #tpu.memory_space<vmem>>, vector<2x64xbf16>
    tpu.vector_store %arg7[%c0_26, %c896], %48 {strides = array<i32>} : memref<2x2304xbf16, #tpu.memory_space<vmem>>, vector<2x64xbf16>,
    %50 = vector.extract_strided_slice %19 {offsets = [30, 0], sizes = [2, 64], strides = [1, 1]} : vector<72x64xbf16> to vector<2x64xbf16>
    %c0_27 = arith.constant 0 : index
    %c960 = arith.constant 960 : index
    %51 = vector.load %arg7[%c0_27, %c960] : memref<2x2304xbf16, #tpu.memory_space<vmem>>, vector<2x64xbf16>
    tpu.vector_store %arg7[%c0_27, %c960], %50 {strides = array<i32>} : memref<2x2304xbf16, #tpu.memory_space<vmem>>, vector<2x64xbf16>,
    %52 = vector.extract_strided_slice %19 {offsets = [32, 0], sizes = [2, 64], strides = [1, 1]} : vector<72x64xbf16> to vector<2x64xbf16>
    %c0_28 = arith.constant 0 : index
    %c1024 = arith.constant 1024 : index
    %53 = vector.load %arg7[%c0_28, %c1024] : memref<2x2304xbf16, #tpu.memory_space<vmem>>, vector<2x64xbf16>
    tpu.vector_store %arg7[%c0_28, %c1024], %52 {strides = array<i32>} : memref<2x2304xbf16, #tpu.memory_space<vmem>>, vector<2x64xbf16>,
    %54 = vector.extract_strided_slice %19 {offsets = [34, 0], sizes = [2, 64], strides = [1, 1]} : vector<72x64xbf16> to vector<2x64xbf16>
    %c0_29 = arith.constant 0 : index
    %c1088 = arith.constant 1088 : index
    %55 = vector.load %arg7[%c0_29, %c1088] : memref<2x2304xbf16, #tpu.memory_space<vmem>>, vector<2x64xbf16>
    tpu.vector_store %arg7[%c0_29, %c1088], %54 {strides = array<i32>} : memref<2x2304xbf16, #tpu.memory_space<vmem>>, vector<2x64xbf16>,
    %56 = vector.extract_strided_slice %19 {offsets = [36, 0], sizes = [2, 64], strides = [1, 1]} : vector<72x64xbf16> to vector<2x64xbf16>
    %c0_30 = arith.constant 0 : index
    %c1152 = arith.constant 1152 : index
    %57 = vector.load %arg7[%c0_30, %c1152] : memref<2x2304xbf16, #tpu.memory_space<vmem>>, vector<2x64xbf16>
    tpu.vector_store %arg7[%c0_30, %c1152], %56 {strides = array<i32>} : memref<2x2304xbf16, #tpu.memory_space<vmem>>, vector<2x64xbf16>,
    %58 = vector.extract_strided_slice %19 {offsets = [38, 0], sizes = [2, 64], strides = [1, 1]} : vector<72x64xbf16> to vector<2x64xbf16>
    %c0_31 = arith.constant 0 : index
    %c1216 = arith.constant 1216 : index
    %59 = vector.load %arg7[%c0_31, %c1216] : memref<2x2304xbf16, #tpu.memory_space<vmem>>, vector<2x64xbf16>
    tpu.vector_store %arg7[%c0_31, %c1216], %58 {strides = array<i32>} : memref<2x2304xbf16, #tpu.memory_space<vmem>>, vector<2x64xbf16>,
    %60 = vector.extract_strided_slice %19 {offsets = [40, 0], sizes = [2, 64], strides = [1, 1]} : vector<72x64xbf16> to vector<2x64xbf16>
    %c0_32 = arith.constant 0 : index
    %c1280 = arith.constant 1280 : index
    %61 = vector.load %arg7[%c0_32, %c1280] : memref<2x2304xbf16, #tpu.memory_space<vmem>>, vector<2x64xbf16>
    tpu.vector_store %arg7[%c0_32, %c1280], %60 {strides = array<i32>} : memref<2x2304xbf16, #tpu.memory_space<vmem>>, vector<2x64xbf16>,
    %62 = vector.extract_strided_slice %19 {offsets = [42, 0], sizes = [2, 64], strides = [1, 1]} : vector<72x64xbf16> to vector<2x64xbf16>
    %c0_33 = arith.constant 0 : index
    %c1344 = arith.constant 1344 : index
    %63 = vector.load %arg7[%c0_33, %c1344] : memref<2x2304xbf16, #tpu.memory_space<vmem>>, vector<2x64xbf16>
    tpu.vector_store %arg7[%c0_33, %c1344], %62 {strides = array<i32>} : memref<2x2304xbf16, #tpu.memory_space<vmem>>, vector<2x64xbf16>,
    %64 = vector.extract_strided_slice %19 {offsets = [44, 0], sizes = [2, 64], strides = [1, 1]} : vector<72x64xbf16> to vector<2x64xbf16>
    %c0_34 = arith.constant 0 : index
    %c1408 = arith.constant 1408 : index
    %65 = vector.load %arg7[%c0_34, %c1408] : memref<2x2304xbf16, #tpu.memory_space<vmem>>, vector<2x64xbf16>
    tpu.vector_store %arg7[%c0_34, %c1408], %64 {strides = array<i32>} : memref<2x2304xbf16, #tpu.memory_space<vmem>>, vector<2x64xbf16>,
    %66 = vector.extract_strided_slice %19 {offsets = [46, 0], sizes = [2, 64], strides = [1, 1]} : vector<72x64xbf16> to vector<2x64xbf16>
    %c0_35 = arith.constant 0 : index
    %c1472 = arith.constant 1472 : index
    %67 = vector.load %arg7[%c0_35, %c1472] : memref<2x2304xbf16, #tpu.memory_space<vmem>>, vector<2x64xbf16>
    tpu.vector_store %arg7[%c0_35, %c1472], %66 {strides = array<i32>} : memref<2x2304xbf16, #tpu.memory_space<vmem>>, vector<2x64xbf16>,
    %68 = vector.extract_strided_slice %19 {offsets = [48, 0], sizes = [2, 64], strides = [1, 1]} : vector<72x64xbf16> to vector<2x64xbf16>
    %c0_36 = arith.constant 0 : index
    %c1536 = arith.constant 1536 : index
    %69 = vector.load %arg7[%c0_36, %c1536] : memref<2x2304xbf16, #tpu.memory_space<vmem>>, vector<2x64xbf16>
    tpu.vector_store %arg7[%c0_36, %c1536], %68 {strides = array<i32>} : memref<2x2304xbf16, #tpu.memory_space<vmem>>, vector<2x64xbf16>,
    %70 = vector.extract_strided_slice %19 {offsets = [50, 0], sizes = [2, 64], strides = [1, 1]} : vector<72x64xbf16> to vector<2x64xbf16>
    %c0_37 = arith.constant 0 : index
    %c1600 = arith.constant 1600 : index
    %71 = vector.load %arg7[%c0_37, %c1600] : memref<2x2304xbf16, #tpu.memory_space<vmem>>, vector<2x64xbf16>
    tpu.vector_store %arg7[%c0_37, %c1600], %70 {strides = array<i32>} : memref<2x2304xbf16, #tpu.memory_space<vmem>>, vector<2x64xbf16>,
    %72 = vector.extract_strided_slice %19 {offsets = [52, 0], sizes = [2, 64], strides = [1, 1]} : vector<72x64xbf16> to vector<2x64xbf16>
    %c0_38 = arith.constant 0 : index
    %c1664 = arith.constant 1664 : index
    %73 = vector.load %arg7[%c0_38, %c1664] : memref<2x2304xbf16, #tpu.memory_space<vmem>>, vector<2x64xbf16>
    tpu.vector_store %arg7[%c0_38, %c1664], %72 {strides = array<i32>} : memref<2x2304xbf16, #tpu.memory_space<vmem>>, vector<2x64xbf16>,
    %74 = vector.extract_strided_slice %19 {offsets = [54, 0], sizes = [2, 64], strides = [1, 1]} : vector<72x64xbf16> to vector<2x64xbf16>
    %c0_39 = arith.constant 0 : index
    %c1728 = arith.constant 1728 : index
    %75 = vector.load %arg7[%c0_39, %c1728] : memref<2x2304xbf16, #tpu.memory_space<vmem>>, vector<2x64xbf16>
    tpu.vector_store %arg7[%c0_39, %c1728], %74 {strides = array<i32>} : memref<2x2304xbf16, #tpu.memory_space<vmem>>, vector<2x64xbf16>,
    %76 = vector.extract_strided_slice %19 {offsets = [56, 0], sizes = [2, 64], strides = [1, 1]} : vector<72x64xbf16> to vector<2x64xbf16>
    %c0_40 = arith.constant 0 : index
    %c1792 = arith.constant 1792 : index
    %77 = vector.load %arg7[%c0_40, %c1792] : memref<2x2304xbf16, #tpu.memory_space<vmem>>, vector<2x64xbf16>
    tpu.vector_store %arg7[%c0_40, %c1792], %76 {strides = array<i32>} : memref<2x2304xbf16, #tpu.memory_space<vmem>>, vector<2x64xbf16>,
    %78 = vector.extract_strided_slice %19 {offsets = [58, 0], sizes = [2, 64], strides = [1, 1]} : vector<72x64xbf16> to vector<2x64xbf16>
    %c0_41 = arith.constant 0 : index
    %c1856 = arith.constant 1856 : index
    %79 = vector.load %arg7[%c0_41, %c1856] : memref<2x2304xbf16, #tpu.memory_space<vmem>>, vector<2x64xbf16>
    tpu.vector_store %arg7[%c0_41, %c1856], %78 {strides = array<i32>} : memref<2x2304xbf16, #tpu.memory_space<vmem>>, vector<2x64xbf16>,
    %80 = vector.extract_strided_slice %19 {offsets = [60, 0], sizes = [2, 64], strides = [1, 1]} : vector<72x64xbf16> to vector<2x64xbf16>
    %c0_42 = arith.constant 0 : index
    %c1920 = arith.constant 1920 : index
    %81 = vector.load %arg7[%c0_42, %c1920] : memref<2x2304xbf16, #tpu.memory_space<vmem>>, vector<2x64xbf16>
    tpu.vector_store %arg7[%c0_42, %c1920], %80 {strides = array<i32>} : memref<2x2304xbf16, #tpu.memory_space<vmem>>, vector<2x64xbf16>,
    %82 = vector.extract_strided_slice %19 {offsets = [62, 0], sizes = [2, 64], strides = [1, 1]} : vector<72x64xbf16> to vector<2x64xbf16>
    %c0_43 = arith.constant 0 : index
    %c1984 = arith.constant 1984 : index
    %83 = vector.load %arg7[%c0_43, %c1984] : memref<2x2304xbf16, #tpu.memory_space<vmem>>, vector<2x64xbf16>
    tpu.vector_store %arg7[%c0_43, %c1984], %82 {strides = array<i32>} : memref<2x2304xbf16, #tpu.memory_space<vmem>>, vector<2x64xbf16>,
    %84 = vector.extract_strided_slice %19 {offsets = [64, 0], sizes = [2, 64], strides = [1, 1]} : vector<72x64xbf16> to vector<2x64xbf16>
    %c0_44 = arith.constant 0 : index
    %c2048 = arith.constant 2048 : index
    %85 = vector.load %arg7[%c0_44, %c2048] : memref<2x2304xbf16, #tpu.memory_space<vmem>>, vector<2x64xbf16>
    tpu.vector_store %arg7[%c0_44, %c2048], %84 {strides = array<i32>} : memref<2x2304xbf16, #tpu.memory_space<vmem>>, vector<2x64xbf16>,
    %86 = vector.extract_strided_slice %19 {offsets = [66, 0], sizes = [2, 64], strides = [1, 1]} : vector<72x64xbf16> to vector<2x64xbf16>
    %c0_45 = arith.constant 0 : index
    %c2112 = arith.constant 2112 : index
    %87 = vector.load %arg7[%c0_45, %c2112] : memref<2x2304xbf16, #tpu.memory_space<vmem>>, vector<2x64xbf16>
    tpu.vector_store %arg7[%c0_45, %c2112], %86 {strides = array<i32>} : memref<2x2304xbf16, #tpu.memory_space<vmem>>, vector<2x64xbf16>,
    %88 = vector.extract_strided_slice %19 {offsets = [68, 0], sizes = [2, 64], strides = [1, 1]} : vector<72x64xbf16> to vector<2x64xbf16>
    %c0_46 = arith.constant 0 : index
    %c2176 = arith.constant 2176 : index
    %89 = vector.load %arg7[%c0_46, %c2176] : memref<2x2304xbf16, #tpu.memory_space<vmem>>, vector<2x64xbf16>
    tpu.vector_store %arg7[%c0_46, %c2176], %88 {strides = array<i32>} : memref<2x2304xbf16, #tpu.memory_space<vmem>>, vector<2x64xbf16>,
    %90 = vector.extract_strided_slice %19 {offsets = [70, 0], sizes = [2, 64], strides = [1, 1]} : vector<72x64xbf16> to vector<2x64xbf16>
    %c0_47 = arith.constant 0 : index
    %c2240 = arith.constant 2240 : index
    %91 = vector.load %arg7[%c0_47, %c2240] : memref<2x2304xbf16, #tpu.memory_space<vmem>>, vector<2x64xbf16>
    tpu.vector_store %arg7[%c0_47, %c2240], %90 {strides = array<i32>} : memref<2x2304xbf16, #tpu.memory_space<vmem>>, vector<2x64xbf16>,
    %c0_48 = arith.constant 0 : index
    %c0_49 = arith.constant 0 : index
    %92 = vector.load %arg4[%c0_48, %c0_49] : memref<2305x32xbf16, #tpu.memory_space<vmem>>, vector<2304x32xbf16>
    %c2304 = arith.constant 2304 : index
    %c0_50 = arith.constant 0 : index
    %93 = vector.load %arg4[%c2304, %c0_50] : memref<2305x32xbf16, #tpu.memory_space<vmem>>, vector<1x32xbf16>
    %94 = arith.extf %93 : vector<1x32xbf16> to vector<1x32xf32>
    %c0_51 = arith.constant 0 : index
    %c0_52 = arith.constant 0 : index
    %95 = vector.load %arg7[%c0_51, %c0_52] : memref<2x2304xbf16, #tpu.memory_space<vmem>>, vector<2x2304xbf16>
    %cst_53 = arith.constant dense<0.000000e+00> : vector<2x32xf32>
    %96 = tpu.matmul %95, %92, %cst_53 {dimension_numbers = #tpu.dot_dimension_numbers<[1], [0], [0], [1], [0, 0, 1, 1], [], []>} : vector<2x2304xbf16>, vector<2304x32xbf16>, vector<2x32xf32> -> vector<2x32xf32>
    %97 = vector.broadcast %94 : vector<1x32xf32> to vector<2x32xf32>
    %98 = arith.addf %96, %97 : vector<2x32xf32>
    %cst_54 = arith.constant 0.000000e+00 : f32
    %99 = vector.broadcast %cst_54 : f32 to vector<2x32xf32>
    %100 = arith.maximumf %98, %99 : vector<2x32xf32>
    %c0_55 = arith.constant 0 : index
    %c0_56 = arith.constant 0 : index
    %101 = vector.load %arg5[%c0_55, %c0_56] : memref<162x128xbf16, #tpu.memory_space<vmem>>, vector<128x128xbf16>
    %c128_57 = arith.constant 128 : index
    %c0_58 = arith.constant 0 : index
    %102 = vector.load %arg5[%c128_57, %c0_58] : memref<162x128xbf16, #tpu.memory_space<vmem>>, vector<32x128xbf16>
    %c160 = arith.constant 160 : index
    %c0_59 = arith.constant 0 : index
    %103 = vector.load %arg5[%c160, %c0_59] : memref<162x128xbf16, #tpu.memory_space<vmem>>, vector<1x128xbf16>
    %104 = arith.extf %103 : vector<1x128xbf16> to vector<1x128xf32>
    %c161 = arith.constant 161 : index
    %c0_60 = arith.constant 0 : index
    %105 = vector.load %arg5[%c161, %c0_60] : memref<162x128xbf16, #tpu.memory_space<vmem>>, vector<1x128xbf16>
    %106 = arith.extf %105 : vector<1x128xbf16> to vector<1x128xf32>
    %107 = arith.truncf %100 : vector<2x32xf32> to vector<2x32xbf16>
    %cst_61 = arith.constant dense<0.000000e+00> : vector<2x128xf32>
    %108 = tpu.matmul %107, %102, %cst_61 {dimension_numbers = #tpu.dot_dimension_numbers<[1], [0], [0], [1], [0, 0, 1, 1], [], []>} : vector<2x32xbf16>, vector<32x128xbf16>, vector<2x128xf32> -> vector<2x128xf32>
    %109 = vector.broadcast %104 : vector<1x128xf32> to vector<2x128xf32>
    %110 = arith.addf %108, %109 : vector<2x128xf32>
    %cst_62 = arith.constant 0.000000e+00 : f32
    %111 = vector.broadcast %cst_62 : f32 to vector<2x128xf32>
    %112 = arith.maximumf %110, %111 : vector<2x128xf32>
    %113 = arith.truncf %112 : vector<2x128xf32> to vector<2x128xbf16>
    %cst_63 = arith.constant dense<0.000000e+00> : vector<2x128xf32>
    %114 = tpu.matmul %113, %101, %cst_63 {dimension_numbers = #tpu.dot_dimension_numbers<[1], [0], [0], [1], [0, 0, 1, 1], [], []>} : vector<2x128xbf16>, vector<128x128xbf16>, vector<2x128xf32> -> vector<2x128xf32>
    %115 = vector.broadcast %106 : vector<1x128xf32> to vector<2x128xf32>
    %116 = arith.addf %114, %115 : vector<2x128xf32>
    %c0_64 = arith.constant 0 : index
    %c0_65 = arith.constant 0 : index
    %117 = vector.load %arg6[%c0_64, %c0_65] : memref<2x128xf32, #tpu.memory_space<vmem>>, vector<2x128xf32>
    tpu.vector_store %arg6[%c0_64, %c0_65], %116 {strides = array<i32>} : memref<2x128xf32, #tpu.memory_space<vmem>>, vector<2x128xf32>,
    return
  }
  func.func @transform_0(%arg0: i32) -> (i32, i32, i32) {
    %c0_i32 = arith.constant 0 : i32
    %c0_i32_0 = arith.constant 0 : i32
    %c0_i32_1 = arith.constant 0 : i32
    return %arg0, %c0_i32, %c0_i32_0 : i32, i32, i32
  }
  func.func @transform_1(%arg0: i32) -> (i32, i32) {
    %c0_i32 = arith.constant 0 : i32
    %c0_i32_0 = arith.constant 0 : i32
    %c0_i32_1 = arith.constant 0 : i32
    return %c0_i32, %c0_i32_0 : i32, i32
  }
  func.func @transform_2(%arg0: i32) -> (i32, i32) {
    %c0_i32 = arith.constant 0 : i32
    %c0_i32_0 = arith.constant 0 : i32
    %c0_i32_1 = arith.constant 0 : i32
    return %c0_i32, %c0_i32_0 : i32, i32
  }
  func.func @transform_3(%arg0: i32) -> (i32, i32) {
    %c0_i32 = arith.constant 0 : i32
    %c0_i32_0 = arith.constant 0 : i32
    %c0_i32_1 = arith.constant 0 : i32
    return %c0_i32, %c0_i32_0 : i32, i32
  }
  func.func @transform_4(%arg0: i32) -> (i32, i32) {
    %c0_i32 = arith.constant 0 : i32
    %c0_i32_0 = arith.constant 0 : i32
    %c0_i32_1 = arith.constant 0 : i32
    return %c0_i32, %c0_i32_0 : i32, i32
  }
  func.func @transform_5(%arg0: i32) -> (i32, i32) {
    %c0_i32 = arith.constant 0 : i32
    %c0_i32_0 = arith.constant 0 : i32
    return %arg0, %c0_i32 : i32, i32
  }
}

</mosaic_0001>

<llo_original>
// kernel: forward.1
$region0: #{forward.1}
  #allocation0 [shape = 'u32[]', space=smem, size = 0x4, offset = 0x4, fixed_abs, tag = 'smem constant byte address 0x4 - core index']
  #allocation1 [shape = 'u32[144,128]{1,0:T(1,128)}', space=vmem, size = 0x12000, scoped, tag = 'internal scratch']
  #allocation2 [shape = 'bf16[2,2304]{1,0:T(2,128)(2,1)}', space=vmem, size = 0x2400, scoped, tag = 'scratch operand']
  %s0 = inlined_call_operand.vmem [shape: bf16[1,72,81], index: 0, kind: input, shape index: {}]
  %s1 = inlined_call_operand.vmem [shape: bf16[82,288], index: 1, kind: input, shape index: {}]
  %s2 = inlined_call_operand.vmem [shape: bf16[289,64], index: 2, kind: input, shape index: {}]
  %s3 = inlined_call_operand.vmem [shape: bf16[2305,32], index: 3, kind: input, shape index: {}]
  %s4 = inlined_call_operand.vmem [shape: bf16[162,128], index: 4, kind: input, shape index: {}]
  %s5 = inlined_call_operand.hbm [shape: f32[2,128], index: 5, kind: output, shape index: {}]
  %s6 = sld [smem:[#allocation0]]
  $region30: #{forward.1} parent=0
    _
  %s8 = ssub.s32 1, %s6
  %s9 = scalar_select 0, %s8, %s6
  $region1: #{forward.1} parent=0
    #allocation3 [shape = 'u8[1024]{0}', space=vmem, size = 0x400, scoped, tag = 'output window, operand 0, single buffered']
    #allocation4 [shape = 's32[1]{0}', space=sflag, size = 0x4, scoped, tag = 'scoped memory for forward.1']
    %10 = vsyncpa [#allocation4], 0
    // Predicated region
    $region2: #{forward.1} parent=1 // pred_check
      _
    $region3: #{forward.1} parent=1 // pred_check_branch
      %12 = sbr.rel (0) target = $region5
    $region4: #{forward.1} parent=1 // pred_region
      _
    $region5: #{forward.1} parent=1 // pred_fallthru
      _
    // Predicated region
    $region6: #{forward.1} parent=1 // pred_check
      _
    $region7: #{forward.1} parent=1 // pred_check_branch
      %14 = sbr.rel (0) target = $region9
    $region8: #{forward.1} parent=1 // pred_region
      _
    $region9: #{forward.1} parent=1 // pred_fallthru
      _
    // Predicated region
    $region10: #{forward.1} parent=1 // pred_check
      _
    $region11: #{forward.1} parent=1 // pred_check_branch
      %16 = sbr.rel (0) target = $region13
    $region12: #{forward.1} parent=1 // pred_region
      _
    $region13: #{forward.1} parent=1 // pred_fallthru
      _
    // Predicated region
    $region14: #{forward.1} parent=1 // pred_check
      _
    $region15: #{forward.1} parent=1 // pred_check_branch
      %18 = sbr.rel (0) target = $region17
    $region16: #{forward.1} parent=1 // pred_region
      _
    $region17: #{forward.1} parent=1 // pred_fallthru
      _
    // Predicated region
    $region18: #{forward.1} parent=1 // pred_check
      _
    $region19: #{forward.1} parent=1 // pred_check_branch
      %20 = sbr.rel (0) target = $region21
    $region20: #{forward.1} parent=1 // pred_region
      _
    $region21: #{forward.1} parent=1 // pred_fallthru
      _
    %v22 = vld [vmem:[%s1] sm:$0xff]
    %v23 = vld [vmem:[%s1 + $0x8] sm:$0xf]
    %v24 = vld [vmem:[%s1 + $0xc] sm:$0xff]
    %v25 = vld [vmem:[%s1 + $0x14] sm:$0xf]
    %v26 = vld [vmem:[%s1 + $0x18] sm:$0xff]
    %v27 = vld [vmem:[%s1 + $0x20] sm:$0xf]
    %v28 = vld [vmem:[%s1 + $0x24] sm:$0xff]
    %v29 = vld [vmem:[%s1 + $0x2c] sm:$0xf]
    %v30 = vld [vmem:[%s1 + $0x30] sm:$0xff]
    %v31 = vld [vmem:[%s1 + $0x38] sm:$0xf]
    %v32 = vld [vmem:[%s1 + $0x3c] sm:$0xff]
    %v33 = vld [vmem:[%s1 + $0x44] sm:$0xf]
    %v34 = vld [vmem:[%s1 + $0x48] sm:$0xff]
    %v35 = vld [vmem:[%s1 + $0x50] sm:$0xf]
    %v36 = vld [vmem:[%s1 + $0x54] sm:$0xff]
    %v37 = vld [vmem:[%s1 + $0x5c] sm:$0xf]
    %v38 = vld [vmem:[%s1 + $0x60] sm:$0xff]
    %v39 = vld [vmem:[%s1 + $0x68] sm:$0xf]
    %v40 = vld [vmem:[%s1 + $0x6c] sm:$0xff]
    %v41 = vld [vmem:[%s1 + $0x74] sm:$0xf]
    %v42 = vld [vmem:[%s1 + $0x78] sm:$0x11]
    %v43 = vld [vmem:[%s1 + $0x80] sm:$0x1]
    %v44 = vunpack.c.l.bf16 %v42
    %v45 = vunpack.c.h.bf16 %v42
    %v46 = vunpack.c.l.bf16 %v43
    %v47 = vld [vmem:[%s0] sm:$0xf]
    %v48 = vld [vmem:[%s0 + $0x4] sm:$0xf]
    %v49 = vld [vmem:[%s0 + $0x8] sm:$0xf]
    %v50 = vld [vmem:[%s0 + $0xc] sm:$0xf]
    %v51 = vld [vmem:[%s0 + $0x10] sm:$0xf]
    %v52 = vld [vmem:[%s0 + $0x14] sm:$0xf]
    %v53 = vld [vmem:[%s0 + $0x18] sm:$0xf]
    %v54 = vld [vmem:[%s0 + $0x1c] sm:$0xf]
    %v55 = vld [vmem:[%s0 + $0x20] sm:$0xf]
    %v56 = vlaneseq
    %v57 = vshrl.u32 %v56, 7
    %v58 = vsub.s32 1, %v57
    %v59 = vrot.slane %v44, %v58
    %v60 = vlaneseq
    %v61 = vshrl.u32 %v60, 7
    %v62 = vsub.s32 1, %v61
    %v63 = vrot.slane %v45, %v62
    %v64 = vlaneseq
    %v65 = vshrl.u32 %v64, 7
    %v66 = vsub.s32 1, %v65
    %v67 = vrot.slane %v46, %v66
    %v77 = vunpack.c.l.b16 %v47
    %v78 = vunpack.c.l.b16 %v48
    %v79 = vunpack.c.l.b16 %v49
    %v80 = vunpack.c.l.b16 %v50
    %v81 = vunpack.c.l.b16 %v51
    %v82 = vunpack.c.l.b16 %v52
    %v83 = vunpack.c.l.b16 %v53
    %v84 = vunpack.c.l.b16 %v54
    %v85 = vunpack.c.l.b16 %v55
    %v86 = vpack.c.b16 %v78, %v77
    %v87 = vpack.c.b16 %v80, %v79
    %v88 = vpack.c.b16 %v82, %v81
    %v89 = vpack.c.b16 %v84, %v83
    %v90 = vpack.c.b16 %v85, %v85
    %v113 = vunpack.c.l.b16 %v22
    %v114 = vunpack.c.h.b16 %v22
    %v115 = vunpack.c.l.b16 %v23
    %v116 = vunpack.c.l.b16 %v24
    %v117 = vunpack.c.h.b16 %v24
    %v118 = vunpack.c.l.b16 %v25
    %v119 = vunpack.c.l.b16 %v26
    %v120 = vunpack.c.h.b16 %v26
    %v121 = vunpack.c.l.b16 %v27
    %v122 = vunpack.c.l.b16 %v28
    %v123 = vunpack.c.h.b16 %v28
    %v124 = vunpack.c.l.b16 %v29
    %v125 = vunpack.c.l.b16 %v30
    %v126 = vunpack.c.h.b16 %v30
    %v127 = vunpack.c.l.b16 %v31
    %v128 = vunpack.c.l.b16 %v32
    %v129 = vunpack.c.h.b16 %v32
    %v130 = vunpack.c.l.b16 %v33
    %v131 = vunpack.c.l.b16 %v34
    %v132 = vunpack.c.h.b16 %v34
    %v133 = vunpack.c.l.b16 %v35
    %v134 = vunpack.c.l.b16 %v36
    %v135 = vunpack.c.h.b16 %v36
    %v136 = vunpack.c.l.b16 %v37
    %v137 = vunpack.c.l.b16 %v38
    %v138 = vunpack.c.h.b16 %v38
    %v139 = vunpack.c.l.b16 %v39
    %v140 = vunpack.c.l.b16 %v40
    %v141 = vunpack.c.h.b16 %v40
    %v142 = vunpack.c.l.b16 %v41
    %v143 = vunpack.c.l.b16 %v42
    %v144 = vunpack.c.h.b16 %v42
    %v145 = vunpack.c.l.b16 %v43
    %v146 = vpack.c.b16 %v116, %v113
    %v147 = vpack.c.b16 %v117, %v114
    %v148 = vpack.c.b16 %v118, %v115
    %v149 = vpack.c.b16 %v122, %v119
    %v150 = vpack.c.b16 %v123, %v120
    %v151 = vpack.c.b16 %v124, %v121
    %v152 = vpack.c.b16 %v128, %v125
    %v153 = vpack.c.b16 %v129, %v126
    %v154 = vpack.c.b16 %v130, %v127
    %v155 = vpack.c.b16 %v134, %v131
    %v156 = vpack.c.b16 %v135, %v132
    %v157 = vpack.c.b16 %v136, %v133
    %v158 = vpack.c.b16 %v140, %v137
    %v159 = vpack.c.b16 %v141, %v138
    %v160 = vpack.c.b16 %v142, %v139
    %v161 = vpack.c.b16 %v143, %v143
    %v162 = vpack.c.b16 %v144, %v144
    %v163 = vpack.c.b16 %v145, %v145
    %vm179 = vcmask 662528
    %v181 = vsel %vm179, %v86, 0
    %v184 = vsel %vm179, %v87, 0
    %v187 = vsel %vm179, %v88, 0
    %v190 = vsel %vm179, %v89, 0
    %v193 = vsel %vm179, %v90, 0
    %vm195 = vcmask 1040384
    %v196 = vsel 0, 4294967295, 65535
    %v197 = vsel %vm195, %v196, 0
    %v199 = vand.u32 %v161, %v197
    %v202 = vand.u32 %v162, %v197
    %v205 = vand.u32 %v163, %v197
    %207 = vmatprep.subr.bf16.mxu0 %v147
    %208 = vmatpush1.bf16.msra.mxu0 %v146
    %209 = vmatprep.subr.bf16.mxu0 %v150
    %210 = vmatpush1.bf16.msra.mxu0 %v149
    %211 = vmatprep.subr.bf16.mxu0 %v153
    %212 = vmatpush1.bf16.msra.mxu0 %v152
    %213 = vmatprep.subr.bf16.mxu0 %v156
    %214 = vmatpush1.bf16.msra.mxu0 %v155
    %215 = vmatprep.subr.bf16.mxu0 %v159
    %216 = vmatpush1.bf16.msra.mxu0 %v158
    %217 = vmatprep.subr.bf16.mxu0 %v202
    %218 = vmatpush1.bf16.msra.mxu0 %v199
    %219 = vmatprep.subr.bf16.mxu0 0
    %220 = vmatpush1.bf16.msra.mxu0 0
    %221 = vmatprep.subr.bf16.mxu0 0
    %222 = vmatpush1.bf16.msra.mxu0 0
    %223 = vmatprep.subr.bf16.mxu0 0
    %224 = vmatpush1.bf16.msra.mxu0 0
    %225 = vmatprep.subr.bf16.mxu0 0
    %226 = vmatpush1.bf16.msra.mxu0 0
    %227 = vmatprep.subr.bf16.mxu0 0
    %228 = vmatpush1.bf16.msra.mxu0 0
    %229 = vmatprep.subr.bf16.mxu0 0
    %230 = vmatpush1.bf16.msra.mxu0 0
    %231 = vmatprep.subr.bf16.mxu0 0
    %232 = vmatpush1.bf16.msra.mxu0 0
    %233 = vmatprep.subr.bf16.mxu0 0
    %234 = vmatpush1.bf16.msra.mxu0 0
    %235 = vmatprep.subr.bf16.mxu0 0
    %236 = vmatpush1.bf16.msra.mxu0 0
    %237 = vmatprep.subr.bf16.mxu0 0
    %238 = vmatpush1.bf16.msra.mxu0 0
    %239 = vmatprep.mubr.bf16.mxu0 0
    %240 = vmatmul.mubr.bf16.gmra.mrb[0].mxu0 %v181
    %v241 = vpop.f32.mrb[0].mxu0
    %v242 = vadd.f32 %v59, %v241
    %v243 = vpop.f32.mrb[0].mxu0
    %v244 = vadd.f32 %v63, %v243
    %v245 = vpop.f32.mrb[0].mxu0
    %v246 = vadd.f32 %v59, %v245
    %v247 = vpop.f32.mrb[0].mxu0
    %v248 = vadd.f32 %v63, %v247
    %249 = vmatprep.mubr.bf16.mxu0 0
    %250 = vmatmul.mubr.bf16.gmra.mrb[0].mxu0 %v184
    %v251 = vpop.f32.mrb[0].mxu0
    %v252 = vadd.f32 %v59, %v251
    %v253 = vpop.f32.mrb[0].mxu0
    %v254 = vadd.f32 %v63, %v253
    %v255 = vpop.f32.mrb[0].mxu0
    %v256 = vadd.f32 %v59, %v255
    %v257 = vpop.f32.mrb[0].mxu0
    %v258 = vadd.f32 %v63, %v257
    %259 = vmatprep.mubr.bf16.mxu0 0
    %260 = vmatmul.mubr.bf16.gmra.mrb[0].mxu0 %v187
    %v261 = vpop.f32.mrb[0].mxu0
    %v262 = vadd.f32 %v59, %v261
    %v263 = vpop.f32.mrb[0].mxu0
    %v264 = vadd.f32 %v63, %v263
    %v265 = vpop.f32.mrb[0].mxu0
    %v266 = vadd.f32 %v59, %v265
    %v267 = vpop.f32.mrb[0].mxu0
    %v268 = vadd.f32 %v63, %v267
    %269 = vmatprep.mubr.bf16.mxu0 0
    %270 = vmatmul.mubr.bf16.gmra.mrb[0].mxu0 %v190
    %v271 = vpop.f32.mrb[0].mxu0
    %v272 = vadd.f32 %v59, %v271
    %v273 = vpop.f32.mrb[0].mxu0
    %v274 = vadd.f32 %v63, %v273
    %v275 = vpop.f32.mrb[0].mxu0
    %v276 = vadd.f32 %v59, %v275
    %v277 = vpop.f32.mrb[0].mxu0
    %v278 = vadd.f32 %v63, %v277
    %279 = vmatprep.mubr.bf16.mxu0 0
    %280 = vmatmul.mubr.bf16.gmra.mrb[0].mxu0 %v193
    %v281 = vpop.f32.mrb[0].mxu0
    %v282 = vadd.f32 %v59, %v281
    %v283 = vpop.f32.mrb[0].mxu0
    %v284 = vadd.f32 %v63, %v283
    %v285 = vpop.f32.mrb[0].mxu0
    %v286 = vpop.f32.mrb[0].mxu0
    %287 = vdwg.mxu0
    %288 = vmatprep.subr.bf16.mxu0 0
    %289 = vmatpush1.bf16.msra.mxu0 %v148
    %290 = vmatprep.subr.bf16.mxu0 0
    %291 = vmatpush1.bf16.msra.mxu0 %v151
    %292 = vmatprep.subr.bf16.mxu0 0
    %293 = vmatpush1.bf16.msra.mxu0 %v154
    %294 = vmatprep.subr.bf16.mxu0 0
    %295 = vmatpush1.bf16.msra.mxu0 %v157
    %296 = vmatprep.subr.bf16.mxu0 0
    %297 = vmatpush1.bf16.msra.mxu0 %v160
    %298 = vmatprep.subr.bf16.mxu0 0
    %299 = vmatpush1.bf16.msra.mxu0 %v205
    %300 = vmatprep.subr.bf16.mxu0 0
    %301 = vmatpush1.bf16.msra.mxu0 0
    %302 = vmatprep.subr.bf16.mxu0 0
    %303 = vmatpush1.bf16.msra.mxu0 0
    %304 = vmatprep.subr.bf16.mxu0 0
    %305 = vmatpush1.bf16.msra.mxu0 0
    %306 = vmatprep.subr.bf16.mxu0 0
    %307 = vmatpush1.bf16.msra.mxu0 0
    %308 = vmatprep.subr.bf16.mxu0 0
    %309 = vmatpush1.bf16.msra.mxu0 0
    %310 = vmatprep.subr.bf16.mxu0 0
    %311 = vmatpush1.bf16.msra.mxu0 0
    %312 = vmatprep.subr.bf16.mxu0 0
    %313 = vmatpush1.bf16.msra.mxu0 0
    %314 = vmatprep.subr.bf16.mxu0 0
    %315 = vmatpush1.bf16.msra.mxu0 0
    %316 = vmatprep.subr.bf16.mxu0 0
    %317 = vmatpush1.bf16.msra.mxu0 0
    %318 = vmatprep.subr.bf16.mxu0 0
    %319 = vmatpush1.bf16.msra.mxu0 0
    %320 = vmatprep.mubr.bf16.mxu0 0
    %321 = vmatmul.mubr.bf16.gmra.mrb[0].mxu0 %v181
    %v322 = vpop.f32.mrb[0].mxu0
    %v323 = vadd.f32 %v67, %v322
    %v324 = vpop.f32.mrb[0].mxu0
    %v325 = vpop.f32.mrb[0].mxu0
    %v326 = vadd.f32 %v67, %v325
    %v327 = vpop.f32.mrb[0].mxu0
    %328 = vmatprep.mubr.bf16.mxu0 0
    %329 = vmatmul.mubr.bf16.gmra.mrb[0].mxu0 %v184
    %v330 = vpop.f32.mrb[0].mxu0
    %v331 = vadd.f32 %v67, %v330
    %v332 = vpop.f32.mrb[0].mxu0
    %v333 = vpop.f32.mrb[0].mxu0
    %v334 = vadd.f32 %v67, %v333
    %v335 = vpop.f32.mrb[0].mxu0
    %336 = vmatprep.mubr.bf16.mxu0 0
    %337 = vmatmul.mubr.bf16.gmra.mrb[0].mxu0 %v187
    %v338 = vpop.f32.mrb[0].mxu0
    %v339 = vadd.f32 %v67, %v338
    %v340 = vpop.f32.mrb[0].mxu0
    %v341 = vpop.f32.mrb[0].mxu0
    %v342 = vadd.f32 %v67, %v341
    %v343 = vpop.f32.mrb[0].mxu0
    %344 = vmatprep.mubr.bf16.mxu0 0
    %345 = vmatmul.mubr.bf16.gmra.mrb[0].mxu0 %v190
    %v346 = vpop.f32.mrb[0].mxu0
    %v347 = vadd.f32 %v67, %v346
    %v348 = vpop.f32.mrb[0].mxu0
    %v349 = vpop.f32.mrb[0].mxu0
    %v350 = vadd.f32 %v67, %v349
    %v351 = vpop.f32.mrb[0].mxu0
    %352 = vmatprep.mubr.bf16.mxu0 0
    %353 = vmatmul.mubr.bf16.gmra.mrb[0].mxu0 %v193
    %v354 = vpop.f32.mrb[0].mxu0
    %v355 = vadd.f32 %v67, %v354
    %v356 = vpop.f32.mrb[0].mxu0
    %v357 = vpop.f32.mrb[0].mxu0
    %v358 = vpop.f32.mrb[0].mxu0
    %359 = vdwg.mxu0
    %v360 = vmax.f32 %v242, 0.0
    %v361 = vmax.f32 %v244, 0.0
    %v362 = vmax.f32 %v323, 0.0
    %v363 = vmax.f32 %v246, 0.0
    %v364 = vmax.f32 %v248, 0.0
    %v365 = vmax.f32 %v326, 0.0
    %v366 = vmax.f32 %v252, 0.0
    %v367 = vmax.f32 %v254, 0.0
    %v368 = vmax.f32 %v331, 0.0
    %v369 = vmax.f32 %v256, 0.0
    %v370 = vmax.f32 %v258, 0.0
    %v371 = vmax.f32 %v334, 0.0
    %v372 = vmax.f32 %v262, 0.0
    %v373 = vmax.f32 %v264, 0.0
    %v374 = vmax.f32 %v339, 0.0
    %v375 = vmax.f32 %v266, 0.0
    %v376 = vmax.f32 %v268, 0.0
    %v377 = vmax.f32 %v342, 0.0
    %v378 = vmax.f32 %v272, 0.0
    %v379 = vmax.f32 %v274, 0.0
    %v380 = vmax.f32 %v347, 0.0
    %v381 = vmax.f32 %v276, 0.0
    %v382 = vmax.f32 %v278, 0.0
    %v383 = vmax.f32 %v350, 0.0
    %v384 = vmax.f32 %v282, 0.0
    %v385 = vmax.f32 %v284, 0.0
    %v386 = vmax.f32 %v355, 0.0
    %v387 = vld [vmem:[%s2] sm:$0xf]
    %v388 = vld [vmem:[%s2 + $0x4] sm:$0xf]
    %v389 = vld [vmem:[%s2 + $0x8] sm:$0xf]
    %v390 = vld [vmem:[%s2 + $0xc] sm:$0xf]
    %v391 = vld [vmem:[%s2 + $0x10] sm:$0xf]
    %v392 = vld [vmem:[%s2 + $0x14] sm:$0xf]
    %v393 = vld [vmem:[%s2 + $0x18] sm:$0xf]
    %v394 = vld [vmem:[%s2 + $0x1c] sm:$0xf]
    %v395 = vld [vmem:[%s2 + $0x20] sm:$0xf]
    %v396 = vld [vmem:[%s2 + $0x24] sm:$0xf]
    %v397 = vld [vmem:[%s2 + $0x28] sm:$0xf]
    %v398 = vld [vmem:[%s2 + $0x2c] sm:$0xf]
    %v399 = vld [vmem:[%s2 + $0x30] sm:$0xf]
    %v400 = vld [vmem:[%s2 + $0x34] sm:$0xf]
    %v401 = vld [vmem:[%s2 + $0x38] sm:$0xf]
    %v402 = vld [vmem:[%s2 + $0x3c] sm:$0xf]
    %v403 = vld [vmem:[%s2 + $0x40] sm:$0xf]
    %v404 = vld [vmem:[%s2 + $0x44] sm:$0xf]
    %v405 = vld [vmem:[%s2 + $0x48] sm:$0xf]
    %v406 = vld [vmem:[%s2 + $0x4c] sm:$0xf]
    %v407 = vld [vmem:[%s2 + $0x50] sm:$0xf]
    %v408 = vld [vmem:[%s2 + $0x54] sm:$0xf]
    %v409 = vld [vmem:[%s2 + $0x58] sm:$0xf]
    %v410 = vld [vmem:[%s2 + $0x5c] sm:$0xf]
    %v411 = vld [vmem:[%s2 + $0x60] sm:$0xf]
    %v412 = vld [vmem:[%s2 + $0x64] sm:$0xf]
    %v413 = vld [vmem:[%s2 + $0x68] sm:$0xf]
    %v414 = vld [vmem:[%s2 + $0x6c] sm:$0xf]
    %v415 = vld [vmem:[%s2 + $0x70] sm:$0xf]
    %v416 = vld [vmem:[%s2 + $0x74] sm:$0xf]
    %v417 = vld [vmem:[%s2 + $0x78] sm:$0xf]
    %v418 = vld [vmem:[%s2 + $0x7c] sm:$0xf]
    %v419 = vld [vmem:[%s2 + $0x80] sm:$0xf]
    %v420 = vld [vmem:[%s2 + $0x84] sm:$0xf]
    %v421 = vld [vmem:[%s2 + $0x88] sm:$0xf]
    %v422 = vld [vmem:[%s2 + $0x8c] sm:$0xf]
    %v423 = vld [vmem:[%s2 + $0x90] sm:$0x1]
    %v424 = vunpack.c.l.bf16 %v423
    %v425 = vpack.c.bf16 %v363, %v360
    %v426 = vpack.c.bf16 %v364, %v361
    %v427 = vpack.c.bf16 %v365, %v362
    %v428 = vpack.c.bf16 %v369, %v366
    %v429 = vpack.c.bf16 %v370, %v367
    %v430 = vpack.c.bf16 %v371, %v368
    %v431 = vpack.c.bf16 %v375, %v372
    %v432 = vpack.c.bf16 %v376, %v373
    %v433 = vpack.c.bf16 %v377, %v374
    %v434 = vpack.c.bf16 %v381, %v378
    %v435 = vpack.c.bf16 %v382, %v379
    %v436 = vpack.c.bf16 %v383, %v380
    %v437 = vpack.c.bf16 %v384, %v384
    %v438 = vpack.c.bf16 %v385, %v385
    %v439 = vpack.c.bf16 %v386, %v386
    %v440 = vlaneseq
    %v441 = vshrl.u32 %v440, 7
    %v442 = vsub.s32 0, %v441
    %v443 = vrot.slane %v424, %v442
    %v480 = vunpack.c.l.b16 %v387
    %v481 = vunpack.c.l.b16 %v388
    %v482 = vunpack.c.l.b16 %v389
    %v483 = vunpack.c.l.b16 %v390
    %v484 = vunpack.c.l.b16 %v391
    %v485 = vunpack.c.l.b16 %v392
    %v486 = vunpack.c.l.b16 %v393
    %v487 = vunpack.c.l.b16 %v394
    %v488 = vunpack.c.l.b16 %v395
    %v489 = vunpack.c.l.b16 %v396
    %v490 = vunpack.c.l.b16 %v397
    %v491 = vunpack.c.l.b16 %v398
    %v492 = vunpack.c.l.b16 %v399
    %v493 = vunpack.c.l.b16 %v400
    %v494 = vunpack.c.l.b16 %v401
    %v495 = vunpack.c.l.b16 %v402
    %v496 = vunpack.c.l.b16 %v403
    %v497 = vunpack.c.l.b16 %v404
    %v498 = vunpack.c.l.b16 %v405
    %v499 = vunpack.c.l.b16 %v406
    %v500 = vunpack.c.l.b16 %v407
    %v501 = vunpack.c.l.b16 %v408
    %v502 = vunpack.c.l.b16 %v409
    %v503 = vunpack.c.l.b16 %v410
    %v504 = vunpack.c.l.b16 %v411
    %v505 = vunpack.c.l.b16 %v412
    %v506 = vunpack.c.l.b16 %v413
    %v507 = vunpack.c.l.b16 %v414
    %v508 = vunpack.c.l.b16 %v415
    %v509 = vunpack.c.l.b16 %v416
    %v510 = vunpack.c.l.b16 %v417
    %v511 = vunpack.c.l.b16 %v418
    %v512 = vunpack.c.l.b16 %v419
    %v513 = vunpack.c.l.b16 %v420
    %v514 = vunpack.c.l.b16 %v421
    %v515 = vunpack.c.l.b16 %v422
    %v516 = vpack.c.b16 %v481, %v480
    %v517 = vpack.c.b16 %v483, %v482
    %v518 = vpack.c.b16 %v485, %v484
    %v519 = vpack.c.b16 %v487, %v486
    %v520 = vpack.c.b16 %v489, %v488
    %v521 = vpack.c.b16 %v491, %v490
    %v522 = vpack.c.b16 %v493, %v492
    %v523 = vpack.c.b16 %v495, %v494
    %v524 = vpack.c.b16 %v497, %v496
    %v525 = vpack.c.b16 %v499, %v498
    %v526 = vpack.c.b16 %v501, %v500
    %v527 = vpack.c.b16 %v503, %v502
    %v528 = vpack.c.b16 %v505, %v504
    %v529 = vpack.c.b16 %v507, %v506
    %v530 = vpack.c.b16 %v509, %v508
    %v531 = vpack.c.b16 %v511, %v510
    %v532 = vpack.c.b16 %v513, %v512
    %v533 = vpack.c.b16 %v515, %v514
    %vm552 = vcmask 261120
    %v554 = vsel %vm552, %v427, 0
    %v557 = vsel %vm552, %v430, 0
    %v560 = vsel %vm552, %v433, 0
    %v563 = vsel %vm552, %v436, 0
    %v566 = vsel %vm552, %v439, 0
    %568 = vmatprep.subr.bf16.mxu0 0
    %569 = vmatpush1.bf16.msra.mxu0 %v516
    %570 = vmatprep.subr.bf16.mxu0 0
    %571 = vmatpush1.bf16.msra.mxu0 %v517
    %572 = vmatprep.subr.bf16.mxu0 0
    %573 = vmatpush1.bf16.msra.mxu0 %v518
    %574 = vmatprep.subr.bf16.mxu0 0
    %575 = vmatpush1.bf16.msra.mxu0 %v519
    %576 = vmatprep.subr.bf16.mxu0 0
    %577 = vmatpush1.bf16.msra.mxu0 %v520
    %578 = vmatprep.subr.bf16.mxu0 0
    %579 = vmatpush1.bf16.msra.mxu0 %v521
    %580 = vmatprep.subr.bf16.mxu0 0
    %581 = vmatpush1.bf16.msra.mxu0 %v522
    %582 = vmatprep.subr.bf16.mxu0 0
    %583 = vmatpush1.bf16.msra.mxu0 %v523
    %584 = vmatprep.subr.bf16.mxu0 0
    %585 = vmatpush1.bf16.msra.mxu0 %v524
    %586 = vmatprep.subr.bf16.mxu0 0
    %587 = vmatpush1.bf16.msra.mxu0 %v525
    %588 = vmatprep.subr.bf16.mxu0 0
    %589 = vmatpush1.bf16.msra.mxu0 %v526
    %590 = vmatprep.subr.bf16.mxu0 0
    %591 = vmatpush1.bf16.msra.mxu0 %v527
    %592 = vmatprep.subr.bf16.mxu0 0
    %593 = vmatpush1.bf16.msra.mxu0 %v528
    %594 = vmatprep.subr.bf16.mxu0 0
    %595 = vmatpush1.bf16.msra.mxu0 %v529
    %596 = vmatprep.subr.bf16.mxu0 0
    %597 = vmatpush1.bf16.msra.mxu0 %v530
    %598 = vmatprep.subr.bf16.mxu0 0
    %599 = vmatpush1.bf16.msra.mxu0 %v531
    %600 = vmatprep.mubr.bf16.mxu0 %v426
    %601 = vmatmul.mubr.bf16.gmra.mrb[0].mxu0 %v425
    %v602 = vpop.f32.mrb[0].mxu0
    %v603 = vadd.f32 %v443, %v602
    %v604 = vpop.f32.mrb[0].mxu0
    %v605 = vpop.f32.mrb[0].mxu0
    %v606 = vadd.f32 %v443, %v605
    %v607 = vpop.f32.mrb[0].mxu0
    %608 = vmatprep.mubr.bf16.mxu0 %v429
    %609 = vmatmul.mubr.bf16.gmra.mrb[0].mxu0 %v428
    %v610 = vpop.f32.mrb[0].mxu0
    %v611 = vadd.f32 %v443, %v610
    %v612 = vpop.f32.mrb[0].mxu0
    %v613 = vpop.f32.mrb[0].mxu0
    %v614 = vadd.f32 %v443, %v613
    %v615 = vpop.f32.mrb[0].mxu0
    %616 = vmatprep.mubr.bf16.mxu0 %v432
    %617 = vmatmul.mubr.bf16.gmra.mrb[0].mxu0 %v431
    %v618 = vpop.f32.mrb[0].mxu0
    %v619 = vadd.f32 %v443, %v618
    %v620 = vpop.f32.mrb[0].mxu0
    %v621 = vpop.f32.mrb[0].mxu0
    %v622 = vadd.f32 %v443, %v621
    %v623 = vpop.f32.mrb[0].mxu0
    %624 = vmatprep.mubr.bf16.mxu0 %v435
    %625 = vmatmul.mubr.bf16.gmra.mrb[0].mxu0 %v434
    %v626 = vpop.f32.mrb[0].mxu0
    %v627 = vadd.f32 %v443, %v626
    %v628 = vpop.f32.mrb[0].mxu0
    %v629 = vpop.f32.mrb[0].mxu0
    %v630 = vadd.f32 %v443, %v629
    %v631 = vpop.f32.mrb[0].mxu0
    %632 = vmatprep.mubr.bf16.mxu0 %v438
    %633 = vmatmul.mubr.bf16.gmra.mrb[0].mxu0 %v437
    %v634 = vpop.f32.mrb[0].mxu0
    %v635 = vadd.f32 %v443, %v634
    %v636 = vpop.f32.mrb[0].mxu0
    %v637 = vpop.f32.mrb[0].mxu0
    %v638 = vpop.f32.mrb[0].mxu0
    %639 = vdwg.mxu0
    %640 = vmatprep.subr.bf16.mxu0 0
    %641 = vmatpush1.bf16.msra.mxu0 %v532
    %642 = vmatprep.subr.bf16.mxu0 0
    %643 = vmatpush1.bf16.msra.mxu0 %v533
    %644 = vmatprep.subr.bf16.mxu0 0
    %645 = vmatpush1.bf16.msra.mxu0 0
    %646 = vmatprep.subr.bf16.mxu0 0
    %647 = vmatpush1.bf16.msra.mxu0 0
    %648 = vmatprep.subr.bf16.mxu0 0
    %649 = vmatpush1.bf16.msra.mxu0 0
    %650 = vmatprep.subr.bf16.mxu0 0
    %651 = vmatpush1.bf16.msra.mxu0 0
    %652 = vmatprep.subr.bf16.mxu0 0
    %653 = vmatpush1.bf16.msra.mxu0 0
    %654 = vmatprep.subr.bf16.mxu0 0
    %655 = vmatpush1.bf16.msra.mxu0 0
    %656 = vmatprep.subr.bf16.mxu0 0
    %657 = vmatpush1.bf16.msra.mxu0 0
    %658 = vmatprep.subr.bf16.mxu0 0
    %659 = vmatpush1.bf16.msra.mxu0 0
    %660 = vmatprep.subr.bf16.mxu0 0
    %661 = vmatpush1.bf16.msra.mxu0 0
    %662 = vmatprep.subr.bf16.mxu0 0
    %663 = vmatpush1.bf16.msra.mxu0 0
    %664 = vmatprep.subr.bf16.mxu0 0
    %665 = vmatpush1.bf16.msra.mxu0 0
    %666 = vmatprep.subr.bf16.mxu0 0
    %667 = vmatpush1.bf16.msra.mxu0 0
    %668 = vmatprep.subr.bf16.mxu0 0
    %669 = vmatpush1.bf16.msra.mxu0 0
    %670 = vmatprep.subr.bf16.mxu0 0
    %671 = vmatpush1.bf16.msra.mxu0 0
    %672 = vmatprep.mubr.bf16.mxu0 0
    %673 = vmatmul.mubr.bf16.gmra.mrb[0].mxu0 %v554
    %v674 = vpop.f32.mrb[0].mxu0
    %v675 = vadd.f32 %v603, %v674
    %v676 = vpop.f32.mrb[0].mxu0
    %v677 = vpop.f32.mrb[0].mxu0
    %v678 = vadd.f32 %v606, %v677
    %v679 = vpop.f32.mrb[0].mxu0
    %680 = vmatprep.mubr.bf16.mxu0 0
    %681 = vmatmul.mubr.bf16.gmra.mrb[0].mxu0 %v557
    %v682 = vpop.f32.mrb[0].mxu0
    %v683 = vadd.f32 %v611, %v682
    %v684 = vpop.f32.mrb[0].mxu0
    %v685 = vpop.f32.mrb[0].mxu0
    %v686 = vadd.f32 %v614, %v685
    %v687 = vpop.f32.mrb[0].mxu0
    %688 = vmatprep.mubr.bf16.mxu0 0
    %689 = vmatmul.mubr.bf16.gmra.mrb[0].mxu0 %v560
    %v690 = vpop.f32.mrb[0].mxu0
    %v691 = vadd.f32 %v619, %v690
    %v692 = vpop.f32.mrb[0].mxu0
    %v693 = vpop.f32.mrb[0].mxu0
    %v694 = vadd.f32 %v622, %v693
    %v695 = vpop.f32.mrb[0].mxu0
    %696 = vmatprep.mubr.bf16.mxu0 0
    %697 = vmatmul.mubr.bf16.gmra.mrb[0].mxu0 %v563
    %v698 = vpop.f32.mrb[0].mxu0
    %v699 = vadd.f32 %v627, %v698
    %v700 = vpop.f32.mrb[0].mxu0
    %v701 = vpop.f32.mrb[0].mxu0
    %v702 = vadd.f32 %v630, %v701
    %v703 = vpop.f32.mrb[0].mxu0
    %704 = vmatprep.mubr.bf16.mxu0 0
    %705 = vmatmul.mubr.bf16.gmra.mrb[0].mxu0 %v566
    %v706 = vpop.f32.mrb[0].mxu0
    %v707 = vadd.f32 %v635, %v706
    %v708 = vpop.f32.mrb[0].mxu0
    %v709 = vpop.f32.mrb[0].mxu0
    %v710 = vpop.f32.mrb[0].mxu0
    %711 = vdwg.mxu0
    %v712 = vmax.f32 %v675, 0.0
    %v713 = vmax.f32 %v678, 0.0
    %v714 = vmax.f32 %v683, 0.0
    %v715 = vmax.f32 %v686, 0.0
    %v716 = vmax.f32 %v691, 0.0
    %v717 = vmax.f32 %v694, 0.0
    %v718 = vmax.f32 %v699, 0.0
    %v719 = vmax.f32 %v702, 0.0
    %v720 = vmax.f32 %v707, 0.0
    %v721 = vpack.c.bf16 %v713, %v712
    %v722 = vpack.c.bf16 %v715, %v714
    %v723 = vpack.c.bf16 %v717, %v716
    %v724 = vpack.c.bf16 %v719, %v718
    %v725 = vpack.c.bf16 %v720, %v720
    %vm726 = vcmask 516096
    %727 = vst.msk [vmem:[#allocation2] sm:$0x1] %vm726, %v721
    %v730 = vunpack.c.l.s4 1966171168
    %v731 = vunpack.c.0.s8 %v730
    %v732 = vlaneseq
    %v733 = vshrl.u32 %v732, 7
    %v734 = vsub.s32 %v731, %v733
    %v735 = vrot.slane %v721, %v734
    %v736 = vcombine.high %v735, %v735
    %v738 = vunpack.c.l.s4 1966171168
    %v739 = vunpack.c.0.s8 %v738
    %v740 = vlaneseq
    %v741 = vshrl.u32 %v740, 7
    %v742 = vsub.s32 %v739, %v741
    %v743 = vrot.slane %v735, %v742
    %v745 = vunpack.c.l.s4 1966171168
    %v746 = vunpack.c.0.s8 %v745
    %v747 = vlaneseq
    %v748 = vshrl.u32 %v747, 7
    %v749 = vsub.s32 %v746, %v748
    %v750 = vrot.slane %v736, %v749
    %751 = vrot.lane.b32.xlu0 %v750, 64
    %v752 = vpop.permute.xlu0 %751
    %vm754 = vcmask 1040896
    %755 = vst.msk [vmem:[#allocation2] sm:$0x1] %vm754, %v752
    %v756 = vcombine.high %v743, %v743
    %758 = vst.msk [vmem:[#allocation2 + $0x1] sm:$0x1] %vm726, %v756
    %v759 = vcombine.high %v750, %v750
    %760 = vrot.lane.b32.xlu0 %v759, 64
    %v761 = vpop.permute.xlu0 %760
    %763 = vst.msk [vmem:[#allocation2 + $0x1] sm:$0x1] %vm754, %v761
    %v764 = vcombine.high %v721, %v721
    %v766 = vunpack.c.l.s4 1966171168
    %v767 = vunpack.c.0.s8 %v766
    %v768 = vlaneseq
    %v769 = vshrl.u32 %v768, 7
    %v770 = vsub.s32 %v767, %v769
    %v771 = vrot.slane %v764, %v770
    %v773 = vunpack.c.l.s4 1966171168
    %v774 = vunpack.c.0.s8 %v773
    %v775 = vlaneseq
    %v776 = vshrl.u32 %v775, 7
    %v777 = vsub.s32 %v774, %v776
    %v778 = vrot.slane %v771, %v777
    %780 = vst.msk [vmem:[#allocation2 + $0x2] sm:$0x1] %vm726, %v778
    %v781 = vcombine.high %v771, %v771
    %v783 = vunpack.c.l.s4 1966171168
    %v784 = vunpack.c.0.s8 %v783
    %v785 = vlaneseq
    %v786 = vshrl.u32 %v785, 7
    %v787 = vsub.s32 %v784, %v786
    %v788 = vrot.slane %v781, %v787
    %789 = vrot.lane.b32.xlu0 %v788, 64
    %v790 = vpop.permute.xlu0 %789
    %792 = vst.msk [vmem:[#allocation2 + $0x2] sm:$0x1] %vm754, %v790
    %v793 = vcombine.high %v778, %v778
    %795 = vst.msk [vmem:[#allocation2 + $0x3] sm:$0x1] %vm726, %v793
    %v796 = vcombine.high %v788, %v788
    %797 = vrot.lane.b32.xlu0 %v796, 64
    %v798 = vpop.permute.xlu0 %797
    %800 = vst.msk [vmem:[#allocation2 + $0x3] sm:$0x1] %vm754, %v798
    %801 = vst.msk [vmem:[#allocation2 + $0x4] sm:$0x1] %vm726, %v722
    %v804 = vunpack.c.l.s4 1966171168
    %v805 = vunpack.c.0.s8 %v804
    %v806 = vlaneseq
    %v807 = vshrl.u32 %v806, 7
    %v808 = vsub.s32 %v805, %v807
    %v809 = vrot.slane %v722, %v808
    %v810 = vcombine.high %v809, %v809
    %v812 = vunpack.c.l.s4 1966171168
    %v813 = vunpack.c.0.s8 %v812
    %v814 = vlaneseq
    %v815 = vshrl.u32 %v814, 7
    %v816 = vsub.s32 %v813, %v815
    %v817 = vrot.slane %v809, %v816
    %v819 = vunpack.c.l.s4 1966171168
    %v820 = vunpack.c.0.s8 %v819
    %v821 = vlaneseq
    %v822 = vshrl.u32 %v821, 7
    %v823 = vsub.s32 %v820, %v822
    %v824 = vrot.slane %v810, %v823
    %825 = vrot.lane.b32.xlu0 %v824, 64
    %v826 = vpop.permute.xlu0 %825
    %828 = vst.msk [vmem:[#allocation2 + $0x4] sm:$0x1] %vm754, %v826
    %v829 = vcombine.high %v817, %v817
    %831 = vst.msk [vmem:[#allocation2 + $0x5] sm:$0x1] %vm726, %v829
    %v832 = vcombine.high %v824, %v824
    %833 = vrot.lane.b32.xlu0 %v832, 64
    %v834 = vpop.permute.xlu0 %833
    %836 = vst.msk [vmem:[#allocation2 + $0x5] sm:$0x1] %vm754, %v834
    %v837 = vcombine.high %v722, %v722
    %v839 = vunpack.c.l.s4 1966171168
    %v840 = vunpack.c.0.s8 %v839
    %v841 = vlaneseq
    %v842 = vshrl.u32 %v841, 7
    %v843 = vsub.s32 %v840, %v842
    %v844 = vrot.slane %v837, %v843
    %v846 = vunpack.c.l.s4 1966171168
    %v847 = vunpack.c.0.s8 %v846
    %v848 = vlaneseq
    %v849 = vshrl.u32 %v848, 7
    %v850 = vsub.s32 %v847, %v849
    %v851 = vrot.slane %v844, %v850
    %853 = vst.msk [vmem:[#allocation2 + $0x6] sm:$0x1] %vm726, %v851
    %v854 = vcombine.high %v844, %v844
    %v856 = vunpack.c.l.s4 1966171168
    %v857 = vunpack.c.0.s8 %v856
    %v858 = vlaneseq
    %v859 = vshrl.u32 %v858, 7
    %v860 = vsub.s32 %v857, %v859
    %v861 = vrot.slane %v854, %v860
    %862 = vrot.lane.b32.xlu0 %v861, 64
    %v863 = vpop.permute.xlu0 %862
    %865 = vst.msk [vmem:[#allocation2 + $0x6] sm:$0x1] %vm754, %v863
    %v866 = vcombine.high %v851, %v851
    %868 = vst.msk [vmem:[#allocation2 + $0x7] sm:$0x1] %vm726, %v866
    %v869 = vcombine.high %v861, %v861
    %870 = vrot.lane.b32.xlu0 %v869, 64
    %v871 = vpop.permute.xlu0 %870
    %873 = vst.msk [vmem:[#allocation2 + $0x7] sm:$0x1] %vm754, %v871
    %874 = vst.msk [vmem:[#allocation2 + $0x8] sm:$0x1] %vm726, %v723
    %v877 = vunpack.c.l.s4 1966171168
    %v878 = vunpack.c.0.s8 %v877
    %v879 = vlaneseq
    %v880 = vshrl.u32 %v879, 7
    %v881 = vsub.s32 %v878, %v880
    %v882 = vrot.slane %v723, %v881
    %v883 = vcombine.high %v882, %v882
    %v885 = vunpack.c.l.s4 1966171168
    %v886 = vunpack.c.0.s8 %v885
    %v887 = vlaneseq
    %v888 = vshrl.u32 %v887, 7
    %v889 = vsub.s32 %v886, %v888
    %v890 = vrot.slane %v882, %v889
    %v892 = vunpack.c.l.s4 1966171168
    %v893 = vunpack.c.0.s8 %v892
    %v894 = vlaneseq
    %v895 = vshrl.u32 %v894, 7
    %v896 = vsub.s32 %v893, %v895
    %v897 = vrot.slane %v883, %v896
    %898 = vrot.lane.b32.xlu0 %v897, 64
    %v899 = vpop.permute.xlu0 %898
    %901 = vst.msk [vmem:[#allocation2 + $0x8] sm:$0x1] %vm754, %v899
    %v902 = vcombine.high %v890, %v890
    %904 = vst.msk [vmem:[#allocation2 + $0x9] sm:$0x1] %vm726, %v902
    %v905 = vcombine.high %v897, %v897
    %906 = vrot.lane.b32.xlu0 %v905, 64
    %v907 = vpop.permute.xlu0 %906
    %909 = vst.msk [vmem:[#allocation2 + $0x9] sm:$0x1] %vm754, %v907
    %v910 = vcombine.high %v723, %v723
    %v912 = vunpack.c.l.s4 1966171168
    %v913 = vunpack.c.0.s8 %v912
    %v914 = vlaneseq
    %v915 = vshrl.u32 %v914, 7
    %v916 = vsub.s32 %v913, %v915
    %v917 = vrot.slane %v910, %v916
    %v919 = vunpack.c.l.s4 1966171168
    %v920 = vunpack.c.0.s8 %v919
    %v921 = vlaneseq
    %v922 = vshrl.u32 %v921, 7
    %v923 = vsub.s32 %v920, %v922
    %v924 = vrot.slane %v917, %v923
    %926 = vst.msk [vmem:[#allocation2 + $0xa] sm:$0x1] %vm726, %v924
    %v927 = vcombine.high %v917, %v917
    %v929 = vunpack.c.l.s4 1966171168
    %v930 = vunpack.c.0.s8 %v929
    %v931 = vlaneseq
    %v932 = vshrl.u32 %v931, 7
    %v933 = vsub.s32 %v930, %v932
    %v934 = vrot.slane %v927, %v933
    %935 = vrot.lane.b32.xlu0 %v934, 64
    %v936 = vpop.permute.xlu0 %935
    %938 = vst.msk [vmem:[#allocation2 + $0xa] sm:$0x1] %vm754, %v936
    %v939 = vcombine.high %v924, %v924
    %941 = vst.msk [vmem:[#allocation2 + $0xb] sm:$0x1] %vm726, %v939
    %v942 = vcombine.high %v934, %v934
    %943 = vrot.lane.b32.xlu0 %v942, 64
    %v944 = vpop.permute.xlu0 %943
    %946 = vst.msk [vmem:[#allocation2 + $0xb] sm:$0x1] %vm754, %v944
    %947 = vst.msk [vmem:[#allocation2 + $0xc] sm:$0x1] %vm726, %v724
    %v950 = vunpack.c.l.s4 1966171168
    %v951 = vunpack.c.0.s8 %v950
    %v952 = vlaneseq
    %v953 = vshrl.u32 %v952, 7
    %v954 = vsub.s32 %v951, %v953
    %v955 = vrot.slane %v724, %v954
    %v956 = vcombine.high %v955, %v955
    %v958 = vunpack.c.l.s4 1966171168
    %v959 = vunpack.c.0.s8 %v958
    %v960 = vlaneseq
    %v961 = vshrl.u32 %v960, 7
    %v962 = vsub.s32 %v959, %v961
    %v963 = vrot.slane %v955, %v962
    %v965 = vunpack.c.l.s4 1966171168
    %v966 = vunpack.c.0.s8 %v965
    %v967 = vlaneseq
    %v968 = vshrl.u32 %v967, 7
    %v969 = vsub.s32 %v966, %v968
    %v970 = vrot.slane %v956, %v969
    %971 = vrot.lane.b32.xlu0 %v970, 64
    %v972 = vpop.permute.xlu0 %971
    %974 = vst.msk [vmem:[#allocation2 + $0xc] sm:$0x1] %vm754, %v972
    %v975 = vcombine.high %v963, %v963
    %977 = vst.msk [vmem:[#allocation2 + $0xd] sm:$0x1] %vm726, %v975
    %v978 = vcombine.high %v970, %v970
    %979 = vrot.lane.b32.xlu0 %v978, 64
    %v980 = vpop.permute.xlu0 %979
    %982 = vst.msk [vmem:[#allocation2 + $0xd] sm:$0x1] %vm754, %v980
    %v983 = vcombine.high %v724, %v724
    %v985 = vunpack.c.l.s4 1966171168
    %v986 = vunpack.c.0.s8 %v985
    %v987 = vlaneseq
    %v988 = vshrl.u32 %v987, 7
    %v989 = vsub.s32 %v986, %v988
    %v990 = vrot.slane %v983, %v989
    %v992 = vunpack.c.l.s4 1966171168
    %v993 = vunpack.c.0.s8 %v992
    %v994 = vlaneseq
    %v995 = vshrl.u32 %v994, 7
    %v996 = vsub.s32 %v993, %v995
    %v997 = vrot.slane %v990, %v996
    %999 = vst.msk [vmem:[#allocation2 + $0xe] sm:$0x1] %vm726, %v997
    %v1000 = vcombine.high %v990, %v990
    %v1002 = vunpack.c.l.s4 1966171168
    %v1003 = vunpack.c.0.s8 %v1002
    %v1004 = vlaneseq
    %v1005 = vshrl.u32 %v1004, 7
    %v1006 = vsub.s32 %v1003, %v1005
    %v1007 = vrot.slane %v1000, %v1006
    %1008 = vrot.lane.b32.xlu0 %v1007, 64
    %v1009 = vpop.permute.xlu0 %1008
    %1011 = vst.msk [vmem:[#allocation2 + $0xe] sm:$0x1] %vm754, %v1009
    %v1012 = vcombine.high %v997, %v997
    %1014 = vst.msk [vmem:[#allocation2 + $0xf] sm:$0x1] %vm726, %v1012
    %v1015 = vcombine.high %v1007, %v1007
    %1016 = vrot.lane.b32.xlu0 %v1015, 64
    %v1017 = vpop.permute.xlu0 %1016
    %1019 = vst.msk [vmem:[#allocation2 + $0xf] sm:$0x1] %vm754, %v1017
    %1020 = vst.msk [vmem:[#allocation2 + $0x10] sm:$0x1] %vm726, %v725
    %v1023 = vunpack.c.l.s4 1966171168
    %v1024 = vunpack.c.0.s8 %v1023
    %v1025 = vlaneseq
    %v1026 = vshrl.u32 %v1025, 7
    %v1027 = vsub.s32 %v1024, %v1026
    %v1028 = vrot.slane %v725, %v1027
    %v1029 = vcombine.high %v1028, %v1028
    %v1031 = vunpack.c.l.s4 1966171168
    %v1032 = vunpack.c.0.s8 %v1031
    %v1033 = vlaneseq
    %v1034 = vshrl.u32 %v1033, 7
    %v1035 = vsub.s32 %v1032, %v1034
    %v1036 = vrot.slane %v1028, %v1035
    %v1038 = vunpack.c.l.s4 1966171168
    %v1039 = vunpack.c.0.s8 %v1038
    %v1040 = vlaneseq
    %v1041 = vshrl.u32 %v1040, 7
    %v1042 = vsub.s32 %v1039, %v1041
    %v1043 = vrot.slane %v1029, %v1042
    %1044 = vrot.lane.b32.xlu0 %v1043, 64
    %v1045 = vpop.permute.xlu0 %1044
    %1047 = vst.msk [vmem:[#allocation2 + $0x10] sm:$0x1] %vm754, %v1045
    %v1048 = vcombine.high %v1036, %v1036
    %1050 = vst.msk [vmem:[#allocation2 + $0x11] sm:$0x1] %vm726, %v1048
    %v1051 = vcombine.high %v1043, %v1043
    %1052 = vrot.lane.b32.xlu0 %v1051, 64
    %v1053 = vpop.permute.xlu0 %1052
    %1055 = vst.msk [vmem:[#allocation2 + $0x11] sm:$0x1] %vm754, %v1053
    %v1056 = vld [vmem:[%s3] sm:$0xf]
    %v1057 = vld [vmem:[%s3 + $0x4] sm:$0xf]
    %v1058 = vld [vmem:[%s3 + $0x8] sm:$0xf]
    %v1059 = vld [vmem:[%s3 + $0xc] sm:$0xf]
    %v1060 = vld [vmem:[%s3 + $0x10] sm:$0xf]
    %v1061 = vld [vmem:[%s3 + $0x14] sm:$0xf]
    %v1062 = vld [vmem:[%s3 + $0x18] sm:$0xf]
    %v1063 = vld [vmem:[%s3 + $0x1c] sm:$0xf]
    %v1064 = vld [vmem:[%s3 + $0x20] sm:$0xf]
    %v1065 = vld [vmem:[%s3 + $0x24] sm:$0xf]
    %v1066 = vld [vmem:[%s3 + $0x28] sm:$0xf]
    %v1067 = vld [vmem:[%s3 + $0x2c] sm:$0xf]
    %v1068 = vld [vmem:[%s3 + $0x30] sm:$0xf]
    %v1069 = vld [vmem:[%s3 + $0x34] sm:$0xf]
    %v1070 = vld [vmem:[%s3 + $0x38] sm:$0xf]
    %v1071 = vld [vmem:[%s3 + $0x3c] sm:$0xf]
    %v1072 = vld [vmem:[%s3 + $0x40] sm:$0xf]
    %v1073 = vld [vmem:[%s3 + $0x44] sm:$0xf]
    %v1074 = vld [vmem:[%s3 + $0x48] sm:$0xf]
    %v1075 = vld [vmem:[%s3 + $0x4c] sm:$0xf]
    %v1076 = vld [vmem:[%s3 + $0x50] sm:$0xf]
    %v1077 = vld [vmem:[%s3 + $0x54] sm:$0xf]
    %v1078 = vld [vmem:[%s3 + $0x58] sm:$0xf]
    %v1079 = vld [vmem:[%s3 + $0x5c] sm:$0xf]
    %v1080 = vld [vmem:[%s3 + $0x60] sm:$0xf]
    %v1081 = vld [vmem:[%s3 + $0x64] sm:$0xf]
    %v1082 = vld [vmem:[%s3 + $0x68] sm:$0xf]
    %v1083 = vld [vmem:[%s3 + $0x6c] sm:$0xf]
    %v1084 = vld [vmem:[%s3 + $0x70] sm:$0xf]
    %v1085 = vld [vmem:[%s3 + $0x74] sm:$0xf]
    %v1086 = vld [vmem:[%s3 + $0x78] sm:$0xf]
    %v1087 = vld [vmem:[%s3 + $0x7c] sm:$0xf]
    %v1088 = vld [vmem:[%s3 + $0x80] sm:$0xf]
    %v1089 = vld [vmem:[%s3 + $0x84] sm:$0xf]
    %v1090 = vld [vmem:[%s3 + $0x88] sm:$0xf]
    %v1091 = vld [vmem:[%s3 + $0x8c] sm:$0xf]
    %v1092 = vld [vmem:[%s3 + $0x90] sm:$0xf]
    %v1093 = vld [vmem:[%s3 + $0x94] sm:$0xf]
    %v1094 = vld [vmem:[%s3 + $0x98] sm:$0xf]
    %v1095 = vld [vmem:[%s3 + $0x9c] sm:$0xf]
    %v1096 = vld [vmem:[%s3 + $0xa0] sm:$0xf]
    %v1097 = vld [vmem:[%s3 + $0xa4] sm:$0xf]
    %v1098 = vld [vmem:[%s3 + $0xa8] sm:$0xf]
    %v1099 = vld [vmem:[%s3 + $0xac] sm:$0xf]
    %v1100 = vld [vmem:[%s3 + $0xb0] sm:$0xf]
    %v1101 = vld [vmem:[%s3 + $0xb4] sm:$0xf]
    %v1102 = vld [vmem:[%s3 + $0xb8] sm:$0xf]
    %v1103 = vld [vmem:[%s3 + $0xbc] sm:$0xf]
    %v1104 = vld [vmem:[%s3 + $0xc0] sm:$0xf]
    %v1105 = vld [vmem:[%s3 + $0xc4] sm:$0xf]
    %v1106 = vld [vmem:[%s3 + $0xc8] sm:$0xf]
    %v1107 = vld [vmem:[%s3 + $0xcc] sm:$0xf]
    %v1108 = vld [vmem:[%s3 + $0xd0] sm:$0xf]
    %v1109 = vld [vmem:[%s3 + $0xd4] sm:$0xf]
    %v1110 = vld [vmem:[%s3 + $0xd8] sm:$0xf]
    %v1111 = vld [vmem:[%s3 + $0xdc] sm:$0xf]
    %v1112 = vld [vmem:[%s3 + $0xe0] sm:$0xf]
    %v1113 = vld [vmem:[%s3 + $0xe4] sm:$0xf]
    %v1114 = vld [vmem:[%s3 + $0xe8] sm:$0xf]
    %v1115 = vld [vmem:[%s3 + $0xec] sm:$0xf]
    %v1116 = vld [vmem:[%s3 + $0xf0] sm:$0xf]
    %v1117 = vld [vmem:[%s3 + $0xf4] sm:$0xf]
    %v1118 = vld [vmem:[%s3 + $0xf8] sm:$0xf]
    %v1119 = vld [vmem:[%s3 + $0xfc] sm:$0xf]
    %v1120 = vld [vmem:[%s3 + $0x100] sm:$0xf]
    %v1121 = vld [vmem:[%s3 + $0x104] sm:$0xf]
    %v1122 = vld [vmem:[%s3 + $0x108] sm:$0xf]
    %v1123 = vld [vmem:[%s3 + $0x10c] sm:$0xf]
    %v1124 = vld [vmem:[%s3 + $0x110] sm:$0xf]
    %v1125 = vld [vmem:[%s3 + $0x114] sm:$0xf]
    %v1126 = vld [vmem:[%s3 + $0x118] sm:$0xf]
    %v1127 = vld [vmem:[%s3 + $0x11c] sm:$0xf]
    %v1128 = vld [vmem:[%s3 + $0x120] sm:$0xf]
    %v1129 = vld [vmem:[%s3 + $0x124] sm:$0xf]
    %v1130 = vld [vmem:[%s3 + $0x128] sm:$0xf]
    %v1131 = vld [vmem:[%s3 + $0x12c] sm:$0xf]
    %v1132 = vld [vmem:[%s3 + $0x130] sm:$0xf]
    %v1133 = vld [vmem:[%s3 + $0x134] sm:$0xf]
    %v1134 = vld [vmem:[%s3 + $0x138] sm:$0xf]
    %v1135 = vld [vmem:[%s3 + $0x13c] sm:$0xf]
    %v1136 = vld [vmem:[%s3 + $0x140] sm:$0xf]
    %v1137 = vld [vmem:[%s3 + $0x144] sm:$0xf]
    %v1138 = vld [vmem:[%s3 + $0x148] sm:$0xf]
    %v1139 = vld [vmem:[%s3 + $0x14c] sm:$0xf]
    %v1140 = vld [vmem:[%s3 + $0x150] sm:$0xf]
    %v1141 = vld [vmem:[%s3 + $0x154] sm:$0xf]
    %v1142 = vld [vmem:[%s3 + $0x158] sm:$0xf]
    %v1143 = vld [vmem:[%s3 + $0x15c] sm:$0xf]
    %v1144 = vld [vmem:[%s3 + $0x160] sm:$0xf]
    %v1145 = vld [vmem:[%s3 + $0x164] sm:$0xf]
    %v1146 = vld [vmem:[%s3 + $0x168] sm:$0xf]
    %v1147 = vld [vmem:[%s3 + $0x16c] sm:$0xf]
    %v1148 = vld [vmem:[%s3 + $0x170] sm:$0xf]
    %v1149 = vld [vmem:[%s3 + $0x174] sm:$0xf]
    %v1150 = vld [vmem:[%s3 + $0x178] sm:$0xf]
    %v1151 = vld [vmem:[%s3 + $0x17c] sm:$0xf]
    %v1152 = vld [vmem:[%s3 + $0x180] sm:$0xf]
    %v1153 = vld [vmem:[%s3 + $0x184] sm:$0xf]
    %v1154 = vld [vmem:[%s3 + $0x188] sm:$0xf]
    %v1155 = vld [vmem:[%s3 + $0x18c] sm:$0xf]
    %v1156 = vld [vmem:[%s3 + $0x190] sm:$0xf]
    %v1157 = vld [vmem:[%s3 + $0x194] sm:$0xf]
    %v1158 = vld [vmem:[%s3 + $0x198] sm:$0xf]
    %v1159 = vld [vmem:[%s3 + $0x19c] sm:$0xf]
    %v1160 = vld [vmem:[%s3 + $0x1a0] sm:$0xf]
    %v1161 = vld [vmem:[%s3 + $0x1a4] sm:$0xf]
    %v1162 = vld [vmem:[%s3 + $0x1a8] sm:$0xf]
    %v1163 = vld [vmem:[%s3 + $0x1ac] sm:$0xf]
    %v1164 = vld [vmem:[%s3 + $0x1b0] sm:$0xf]
    %v1165 = vld [vmem:[%s3 + $0x1b4] sm:$0xf]
    %v1166 = vld [vmem:[%s3 + $0x1b8] sm:$0xf]
    %v1167 = vld [vmem:[%s3 + $0x1bc] sm:$0xf]
    %v1168 = vld [vmem:[%s3 + $0x1c0] sm:$0xf]
    %v1169 = vld [vmem:[%s3 + $0x1c4] sm:$0xf]
    %v1170 = vld [vmem:[%s3 + $0x1c8] sm:$0xf]
    %v1171 = vld [vmem:[%s3 + $0x1cc] sm:$0xf]
    %v1172 = vld [vmem:[%s3 + $0x1d0] sm:$0xf]
    %v1173 = vld [vmem:[%s3 + $0x1d4] sm:$0xf]
    %v1174 = vld [vmem:[%s3 + $0x1d8] sm:$0xf]
    %v1175 = vld [vmem:[%s3 + $0x1dc] sm:$0xf]
    %v1176 = vld [vmem:[%s3 + $0x1e0] sm:$0xf]
    %v1177 = vld [vmem:[%s3 + $0x1e4] sm:$0xf]
    %v1178 = vld [vmem:[%s3 + $0x1e8] sm:$0xf]
    %v1179 = vld [vmem:[%s3 + $0x1ec] sm:$0xf]
    %v1180 = vld [vmem:[%s3 + $0x1f0] sm:$0xf]
    %v1181 = vld [vmem:[%s3 + $0x1f4] sm:$0xf]
    %v1182 = vld [vmem:[%s3 + $0x1f8] sm:$0xf]
    %v1183 = vld [vmem:[%s3 + $0x1fc] sm:$0xf]
    %v1184 = vld [vmem:[%s3 + $0x200] sm:$0xf]
    %v1185 = vld [vmem:[%s3 + $0x204] sm:$0xf]
    %v1186 = vld [vmem:[%s3 + $0x208] sm:$0xf]
    %v1187 = vld [vmem:[%s3 + $0x20c] sm:$0xf]
    %v1188 = vld [vmem:[%s3 + $0x210] sm:$0xf]
    %v1189 = vld [vmem:[%s3 + $0x214] sm:$0xf]
    %v1190 = vld [vmem:[%s3 + $0x218] sm:$0xf]
    %v1191 = vld [vmem:[%s3 + $0x21c] sm:$0xf]
    %v1192 = vld [vmem:[%s3 + $0x220] sm:$0xf]
    %v1193 = vld [vmem:[%s3 + $0x224] sm:$0xf]
    %v1194 = vld [vmem:[%s3 + $0x228] sm:$0xf]
    %v1195 = vld [vmem:[%s3 + $0x22c] sm:$0xf]
    %v1196 = vld [vmem:[%s3 + $0x230] sm:$0xf]
    %v1197 = vld [vmem:[%s3 + $0x234] sm:$0xf]
    %v1198 = vld [vmem:[%s3 + $0x238] sm:$0xf]
    %v1199 = vld [vmem:[%s3 + $0x23c] sm:$0xf]
    %v1200 = vld [vmem:[%s3 + $0x240] sm:$0xf]
    %v1201 = vld [vmem:[%s3 + $0x244] sm:$0xf]
    %v1202 = vld [vmem:[%s3 + $0x248] sm:$0xf]
    %v1203 = vld [vmem:[%s3 + $0x24c] sm:$0xf]
    %v1204 = vld [vmem:[%s3 + $0x250] sm:$0xf]
    %v1205 = vld [vmem:[%s3 + $0x254] sm:$0xf]
    %v1206 = vld [vmem:[%s3 + $0x258] sm:$0xf]
    %v1207 = vld [vmem:[%s3 + $0x25c] sm:$0xf]
    %v1208 = vld [vmem:[%s3 + $0x260] sm:$0xf]
    %v1209 = vld [vmem:[%s3 + $0x264] sm:$0xf]
    %v1210 = vld [vmem:[%s3 + $0x268] sm:$0xf]
    %v1211 = vld [vmem:[%s3 + $0x26c] sm:$0xf]
    %v1212 = vld [vmem:[%s3 + $0x270] sm:$0xf]
    %v1213 = vld [vmem:[%s3 + $0x274] sm:$0xf]
    %v1214 = vld [vmem:[%s3 + $0x278] sm:$0xf]
    %v1215 = vld [vmem:[%s3 + $0x27c] sm:$0xf]
    %v1216 = vld [vmem:[%s3 + $0x280] sm:$0xf]
    %v1217 = vld [vmem:[%s3 + $0x284] sm:$0xf]
    %v1218 = vld [vmem:[%s3 + $0x288] sm:$0xf]
    %v1219 = vld [vmem:[%s3 + $0x28c] sm:$0xf]
    %v1220 = vld [vmem:[%s3 + $0x290] sm:$0xf]
    %v1221 = vld [vmem:[%s3 + $0x294] sm:$0xf]
    %v1222 = vld [vmem:[%s3 + $0x298] sm:$0xf]
    %v1223 = vld [vmem:[%s3 + $0x29c] sm:$0xf]
    %v1224 = vld [vmem:[%s3 + $0x2a0] sm:$0xf]
    %v1225 = vld [vmem:[%s3 + $0x2a4] sm:$0xf]
    %v1226 = vld [vmem:[%s3 + $0x2a8] sm:$0xf]
    %v1227 = vld [vmem:[%s3 + $0x2ac] sm:$0xf]
    %v1228 = vld [vmem:[%s3 + $0x2b0] sm:$0xf]
    %v1229 = vld [vmem:[%s3 + $0x2b4] sm:$0xf]
    %v1230 = vld [vmem:[%s3 + $0x2b8] sm:$0xf]
    %v1231 = vld [vmem:[%s3 + $0x2bc] sm:$0xf]
    %v1232 = vld [vmem:[%s3 + $0x2c0] sm:$0xf]
    %v1233 = vld [vmem:[%s3 + $0x2c4] sm:$0xf]
    %v1234 = vld [vmem:[%s3 + $0x2c8] sm:$0xf]
    %v1235 = vld [vmem:[%s3 + $0x2cc] sm:$0xf]
    %v1236 = vld [vmem:[%s3 + $0x2d0] sm:$0xf]
    %v1237 = vld [vmem:[%s3 + $0x2d4] sm:$0xf]
    %v1238 = vld [vmem:[%s3 + $0x2d8] sm:$0xf]
    %v1239 = vld [vmem:[%s3 + $0x2dc] sm:$0xf]
    %v1240 = vld [vmem:[%s3 + $0x2e0] sm:$0xf]
    %v1241 = vld [vmem:[%s3 + $0x2e4] sm:$0xf]
    %v1242 = vld [vmem:[%s3 + $0x2e8] sm:$0xf]
    %v1243 = vld [vmem:[%s3 + $0x2ec] sm:$0xf]
    %v1244 = vld [vmem:[%s3 + $0x2f0] sm:$0xf]
    %v1245 = vld [vmem:[%s3 + $0x2f4] sm:$0xf]
    %v1246 = vld [vmem:[%s3 + $0x2f8] sm:$0xf]
    %v1247 = vld [vmem:[%s3 + $0x2fc] sm:$0xf]
    %v1248 = vld [vmem:[%s3 + $0x300] sm:$0xf]
    %v1249 = vld [vmem:[%s3 + $0x304] sm:$0xf]
    %v1250 = vld [vmem:[%s3 + $0x308] sm:$0xf]
    %v1251 = vld [vmem:[%s3 + $0x30c] sm:$0xf]
    %v1252 = vld [vmem:[%s3 + $0x310] sm:$0xf]
    %v1253 = vld [vmem:[%s3 + $0x314] sm:$0xf]
    %v1254 = vld [vmem:[%s3 + $0x318] sm:$0xf]
    %v1255 = vld [vmem:[%s3 + $0x31c] sm:$0xf]
    %v1256 = vld [vmem:[%s3 + $0x320] sm:$0xf]
    %v1257 = vld [vmem:[%s3 + $0x324] sm:$0xf]
    %v1258 = vld [vmem:[%s3 + $0x328] sm:$0xf]
    %v1259 = vld [vmem:[%s3 + $0x32c] sm:$0xf]
    %v1260 = vld [vmem:[%s3 + $0x330] sm:$0xf]
    %v1261 = vld [vmem:[%s3 + $0x334] sm:$0xf]
    %v1262 = vld [vmem:[%s3 + $0x338] sm:$0xf]
    %v1263 = vld [vmem:[%s3 + $0x33c] sm:$0xf]
    %v1264 = vld [vmem:[%s3 + $0x340] sm:$0xf]
    %v1265 = vld [vmem:[%s3 + $0x344] sm:$0xf]
    %v1266 = vld [vmem:[%s3 + $0x348] sm:$0xf]
    %v1267 = vld [vmem:[%s3 + $0x34c] sm:$0xf]
    %v1268 = vld [vmem:[%s3 + $0x350] sm:$0xf]
    %v1269 = vld [vmem:[%s3 + $0x354] sm:$0xf]
    %v1270 = vld [vmem:[%s3 + $0x358] sm:$0xf]
    %v1271 = vld [vmem:[%s3 + $0x35c] sm:$0xf]
    %v1272 = vld [vmem:[%s3 + $0x360] sm:$0xf]
    %v1273 = vld [vmem:[%s3 + $0x364] sm:$0xf]
    %v1274 = vld [vmem:[%s3 + $0x368] sm:$0xf]
    %v1275 = vld [vmem:[%s3 + $0x36c] sm:$0xf]
    %v1276 = vld [vmem:[%s3 + $0x370] sm:$0xf]
    %v1277 = vld [vmem:[%s3 + $0x374] sm:$0xf]
    %v1278 = vld [vmem:[%s3 + $0x378] sm:$0xf]
    %v1279 = vld [vmem:[%s3 + $0x37c] sm:$0xf]
    %v1280 = vld [vmem:[%s3 + $0x380] sm:$0xf]
    %v1281 = vld [vmem:[%s3 + $0x384] sm:$0xf]
    %v1282 = vld [vmem:[%s3 + $0x388] sm:$0xf]
    %v1283 = vld [vmem:[%s3 + $0x38c] sm:$0xf]
    %v1284 = vld [vmem:[%s3 + $0x390] sm:$0xf]
    %v1285 = vld [vmem:[%s3 + $0x394] sm:$0xf]
    %v1286 = vld [vmem:[%s3 + $0x398] sm:$0xf]
    %v1287 = vld [vmem:[%s3 + $0x39c] sm:$0xf]
    %v1288 = vld [vmem:[%s3 + $0x3a0] sm:$0xf]
    %v1289 = vld [vmem:[%s3 + $0x3a4] sm:$0xf]
    %v1290 = vld [vmem:[%s3 + $0x3a8] sm:$0xf]
    %v1291 = vld [vmem:[%s3 + $0x3ac] sm:$0xf]
    %v1292 = vld [vmem:[%s3 + $0x3b0] sm:$0xf]
    %v1293 = vld [vmem:[%s3 + $0x3b4] sm:$0xf]
    %v1294 = vld [vmem:[%s3 + $0x3b8] sm:$0xf]
    %v1295 = vld [vmem:[%s3 + $0x3bc] sm:$0xf]
    %v1296 = vld [vmem:[%s3 + $0x3c0] sm:$0xf]
    %v1297 = vld [vmem:[%s3 + $0x3c4] sm:$0xf]
    %v1298 = vld [vmem:[%s3 + $0x3c8] sm:$0xf]
    %v1299 = vld [vmem:[%s3 + $0x3cc] sm:$0xf]
    %v1300 = vld [vmem:[%s3 + $0x3d0] sm:$0xf]
    %v1301 = vld [vmem:[%s3 + $0x3d4] sm:$0xf]
    %v1302 = vld [vmem:[%s3 + $0x3d8] sm:$0xf]
    %v1303 = vld [vmem:[%s3 + $0x3dc] sm:$0xf]
    %v1304 = vld [vmem:[%s3 + $0x3e0] sm:$0xf]
    %v1305 = vld [vmem:[%s3 + $0x3e4] sm:$0xf]
    %v1306 = vld [vmem:[%s3 + $0x3e8] sm:$0xf]
    %v1307 = vld [vmem:[%s3 + $0x3ec] sm:$0xf]
    %v1308 = vld [vmem:[%s3 + $0x3f0] sm:$0xf]
    %v1309 = vld [vmem:[%s3 + $0x3f4] sm:$0xf]
    %v1310 = vld [vmem:[%s3 + $0x3f8] sm:$0xf]
    %v1311 = vld [vmem:[%s3 + $0x3fc] sm:$0xf]
    %v1312 = vld [vmem:[%s3 + $0x400] sm:$0xf]
    %v1313 = vld [vmem:[%s3 + $0x404] sm:$0xf]
    %v1314 = vld [vmem:[%s3 + $0x408] sm:$0xf]
    %v1315 = vld [vmem:[%s3 + $0x40c] sm:$0xf]
    %v1316 = vld [vmem:[%s3 + $0x410] sm:$0xf]
    %v1317 = vld [vmem:[%s3 + $0x414] sm:$0xf]
    %v1318 = vld [vmem:[%s3 + $0x418] sm:$0xf]
    %v1319 = vld [vmem:[%s3 + $0x41c] sm:$0xf]
    %v1320 = vld [vmem:[%s3 + $0x420] sm:$0xf]
    %v1321 = vld [vmem:[%s3 + $0x424] sm:$0xf]
    %v1322 = vld [vmem:[%s3 + $0x428] sm:$0xf]
    %v1323 = vld [vmem:[%s3 + $0x42c] sm:$0xf]
    %v1324 = vld [vmem:[%s3 + $0x430] sm:$0xf]
    %v1325 = vld [vmem:[%s3 + $0x434] sm:$0xf]
    %v1326 = vld [vmem:[%s3 + $0x438] sm:$0xf]
    %v1327 = vld [vmem:[%s3 + $0x43c] sm:$0xf]
    %v1328 = vld [vmem:[%s3 + $0x440] sm:$0xf]
    %v1329 = vld [vmem:[%s3 + $0x444] sm:$0xf]
    %v1330 = vld [vmem:[%s3 + $0x448] sm:$0xf]
    %v1331 = vld [vmem:[%s3 + $0x44c] sm:$0xf]
    %v1332 = vld [vmem:[%s3 + $0x450] sm:$0xf]
    %v1333 = vld [vmem:[%s3 + $0x454] sm:$0xf]
    %v1334 = vld [vmem:[%s3 + $0x458] sm:$0xf]
    %v1335 = vld [vmem:[%s3 + $0x45c] sm:$0xf]
    %v1336 = vld [vmem:[%s3 + $0x460] sm:$0xf]
    %v1337 = vld [vmem:[%s3 + $0x464] sm:$0xf]
    %v1338 = vld [vmem:[%s3 + $0x468] sm:$0xf]
    %v1339 = vld [vmem:[%s3 + $0x46c] sm:$0xf]
    %v1340 = vld [vmem:[%s3 + $0x470] sm:$0xf]
    %v1341 = vld [vmem:[%s3 + $0x474] sm:$0xf]
    %v1342 = vld [vmem:[%s3 + $0x478] sm:$0xf]
    %v1343 = vld [vmem:[%s3 + $0x47c] sm:$0xf]
    %v1344 = vld [vmem:[%s3 + $0x480] sm:$0x1]
    %v1345 = vunpack.c.l.bf16 %v1344
    %v1346 = vld [vmem:[#allocation2] sm:$0xff]
    %v1347 = vld [vmem:[#allocation2 + $0x8] sm:$0xff]
    %v1348 = vld [vmem:[#allocation2 + $0x10] sm:$0x3]
    %v1349 = vlaneseq
    %v1350 = vshrl.u32 %v1349, 7
    %v1351 = vsub.s32 0, %v1350
    %v1352 = vrot.slane %v1345, %v1351
    %v1356 = vcombine.high %v1346, %v1346
    %v1358 = vunpack.c.l.s4 1966171168
    %v1359 = vunpack.c.0.s8 %v1358
    %v1360 = vlaneseq
    %v1361 = vshrl.u32 %v1360, 7
    %v1362 = vsub.s32 %v1359, %v1361
    %v1363 = vrot.slane %v1346, %v1362
    %v1365 = vunpack.c.l.s4 1966171168
    %v1366 = vunpack.c.0.s8 %v1365
    %v1367 = vlaneseq
    %v1368 = vshrl.u32 %v1367, 7
    %v1369 = vsub.s32 %v1366, %v1368
    %v1370 = vrot.slane %v1356, %v1369
    %v1371 = vcombine.high %v1363, %v1363
    %v1372 = vcombine.high %v1370, %v1370
    %v1374 = vunpack.c.l.s4 1966171168
    %v1375 = vunpack.c.0.s8 %v1374
    %v1376 = vlaneseq
    %v1377 = vshrl.u32 %v1376, 7
    %v1378 = vsub.s32 %v1375, %v1377
    %v1379 = vrot.slane %v1363, %v1378
    %v1381 = vunpack.c.l.s4 1966171168
    %v1382 = vunpack.c.0.s8 %v1381
    %v1383 = vlaneseq
    %v1384 = vshrl.u32 %v1383, 7
    %v1385 = vsub.s32 %v1382, %v1384
    %v1386 = vrot.slane %v1370, %v1385
    %v1388 = vunpack.c.l.s4 1966171168
    %v1389 = vunpack.c.0.s8 %v1388
    %v1390 = vlaneseq
    %v1391 = vshrl.u32 %v1390, 7
    %v1392 = vsub.s32 %v1389, %v1391
    %v1393 = vrot.slane %v1371, %v1392
    %v1395 = vunpack.c.l.s4 1966171168
    %v1396 = vunpack.c.0.s8 %v1395
    %v1397 = vlaneseq
    %v1398 = vshrl.u32 %v1397, 7
    %v1399 = vsub.s32 %v1396, %v1398
    %v1400 = vrot.slane %v1372, %v1399
    %v1401 = vcombine.high %v1379, %v1379
    %v1402 = vcombine.high %v1386, %v1386
    %v1403 = vcombine.high %v1393, %v1393
    %v1404 = vcombine.high %v1400, %v1400
    %v1405 = vcombine.high %v1347, %v1347
    %v1407 = vunpack.c.l.s4 1966171168
    %v1408 = vunpack.c.0.s8 %v1407
    %v1409 = vlaneseq
    %v1410 = vshrl.u32 %v1409, 7
    %v1411 = vsub.s32 %v1408, %v1410
    %v1412 = vrot.slane %v1347, %v1411
    %v1414 = vunpack.c.l.s4 1966171168
    %v1415 = vunpack.c.0.s8 %v1414
    %v1416 = vlaneseq
    %v1417 = vshrl.u32 %v1416, 7
    %v1418 = vsub.s32 %v1415, %v1417
    %v1419 = vrot.slane %v1405, %v1418
    %v1420 = vcombine.high %v1412, %v1412
    %v1421 = vcombine.high %v1419, %v1419
    %v1423 = vunpack.c.l.s4 1966171168
    %v1424 = vunpack.c.0.s8 %v1423
    %v1425 = vlaneseq
    %v1426 = vshrl.u32 %v1425, 7
    %v1427 = vsub.s32 %v1424, %v1426
    %v1428 = vrot.slane %v1412, %v1427
    %v1430 = vunpack.c.l.s4 1966171168
    %v1431 = vunpack.c.0.s8 %v1430
    %v1432 = vlaneseq
    %v1433 = vshrl.u32 %v1432, 7
    %v1434 = vsub.s32 %v1431, %v1433
    %v1435 = vrot.slane %v1419, %v1434
    %v1437 = vunpack.c.l.s4 1966171168
    %v1438 = vunpack.c.0.s8 %v1437
    %v1439 = vlaneseq
    %v1440 = vshrl.u32 %v1439, 7
    %v1441 = vsub.s32 %v1438, %v1440
    %v1442 = vrot.slane %v1420, %v1441
    %v1444 = vunpack.c.l.s4 1966171168
    %v1445 = vunpack.c.0.s8 %v1444
    %v1446 = vlaneseq
    %v1447 = vshrl.u32 %v1446, 7
    %v1448 = vsub.s32 %v1445, %v1447
    %v1449 = vrot.slane %v1421, %v1448
    %v1450 = vcombine.high %v1428, %v1428
    %v1451 = vcombine.high %v1435, %v1435
    %v1452 = vcombine.high %v1442, %v1442
    %v1453 = vcombine.high %v1449, %v1449
    %v1455 = vunpack.c.l.s4 1966171168
    %v1456 = vunpack.c.0.s8 %v1455
    %v1457 = vlaneseq
    %v1458 = vshrl.u32 %v1457, 7
    %v1459 = vsub.s32 %v1456, %v1458
    %v1460 = vrot.slane %v1348, %v1459
    %v1461 = vcombine.high %v1460, %v1460
    %v1463 = vunpack.c.l.s4 1966171168
    %v1464 = vunpack.c.0.s8 %v1463
    %v1465 = vlaneseq
    %v1466 = vshrl.u32 %v1465, 7
    %v1467 = vsub.s32 %v1464, %v1466
    %v1468 = vrot.slane %v1460, %v1467
    %v1470 = vunpack.c.l.s4 1966171168
    %v1471 = vunpack.c.0.s8 %v1470
    %v1472 = vlaneseq
    %v1473 = vshrl.u32 %v1472, 7
    %v1474 = vsub.s32 %v1471, %v1473
    %v1475 = vrot.slane %v1461, %v1474
    %v1782 = vunpack.c.l.b16 %v1056
    %v1783 = vunpack.c.l.b16 %v1057
    %v1784 = vunpack.c.l.b16 %v1058
    %v1785 = vunpack.c.l.b16 %v1059
    %v1786 = vunpack.c.l.b16 %v1060
    %v1787 = vunpack.c.l.b16 %v1061
    %v1788 = vunpack.c.l.b16 %v1062
    %v1789 = vunpack.c.l.b16 %v1063
    %v1790 = vunpack.c.l.b16 %v1064
    %v1791 = vunpack.c.l.b16 %v1065
    %v1792 = vunpack.c.l.b16 %v1066
    %v1793 = vunpack.c.l.b16 %v1067
    %v1794 = vunpack.c.l.b16 %v1068
    %v1795 = vunpack.c.l.b16 %v1069
    %v1796 = vunpack.c.l.b16 %v1070
    %v1797 = vunpack.c.l.b16 %v1071
    %v1798 = vunpack.c.l.b16 %v1072
    %v1799 = vunpack.c.l.b16 %v1073
    %v1800 = vunpack.c.l.b16 %v1074
    %v1801 = vunpack.c.l.b16 %v1075
    %v1802 = vunpack.c.l.b16 %v1076
    %v1803 = vunpack.c.l.b16 %v1077
    %v1804 = vunpack.c.l.b16 %v1078
    %v1805 = vunpack.c.l.b16 %v1079
    %v1806 = vunpack.c.l.b16 %v1080
    %v1807 = vunpack.c.l.b16 %v1081
    %v1808 = vunpack.c.l.b16 %v1082
    %v1809 = vunpack.c.l.b16 %v1083
    %v1810 = vunpack.c.l.b16 %v1084
    %v1811 = vunpack.c.l.b16 %v1085
    %v1812 = vunpack.c.l.b16 %v1086
    %v1813 = vunpack.c.l.b16 %v1087
    %v1814 = vunpack.c.l.b16 %v1088
    %v1815 = vunpack.c.l.b16 %v1089
    %v1816 = vunpack.c.l.b16 %v1090
    %v1817 = vunpack.c.l.b16 %v1091
    %v1818 = vunpack.c.l.b16 %v1092
    %v1819 = vunpack.c.l.b16 %v1093
    %v1820 = vunpack.c.l.b16 %v1094
    %v1821 = vunpack.c.l.b16 %v1095
    %v1822 = vunpack.c.l.b16 %v1096
    %v1823 = vunpack.c.l.b16 %v1097
    %v1824 = vunpack.c.l.b16 %v1098
    %v1825 = vunpack.c.l.b16 %v1099
    %v1826 = vunpack.c.l.b16 %v1100
    %v1827 = vunpack.c.l.b16 %v1101
    %v1828 = vunpack.c.l.b16 %v1102
    %v1829 = vunpack.c.l.b16 %v1103
    %v1830 = vunpack.c.l.b16 %v1104
    %v1831 = vunpack.c.l.b16 %v1105
    %v1832 = vunpack.c.l.b16 %v1106
    %v1833 = vunpack.c.l.b16 %v1107
    %v1834 = vunpack.c.l.b16 %v1108
    %v1835 = vunpack.c.l.b16 %v1109
    %v1836 = vunpack.c.l.b16 %v1110
    %v1837 = vunpack.c.l.b16 %v1111
    %v1838 = vunpack.c.l.b16 %v1112
    %v1839 = vunpack.c.l.b16 %v1113
    %v1840 = vunpack.c.l.b16 %v1114
    %v1841 = vunpack.c.l.b16 %v1115
    %v1842 = vunpack.c.l.b16 %v1116
    %v1843 = vunpack.c.l.b16 %v1117
    %v1844 = vunpack.c.l.b16 %v1118
    %v1845 = vunpack.c.l.b16 %v1119
    %v1846 = vunpack.c.l.b16 %v1120
    %v1847 = vunpack.c.l.b16 %v1121
    %v1848 = vunpack.c.l.b16 %v1122
    %v1849 = vunpack.c.l.b16 %v1123
    %v1850 = vunpack.c.l.b16 %v1124
    %v1851 = vunpack.c.l.b16 %v1125
    %v1852 = vunpack.c.l.b16 %v1126
    %v1853 = vunpack.c.l.b16 %v1127
    %v1854 = vunpack.c.l.b16 %v1128
    %v1855 = vunpack.c.l.b16 %v1129
    %v1856 = vunpack.c.l.b16 %v1130
    %v1857 = vunpack.c.l.b16 %v1131
    %v1858 = vunpack.c.l.b16 %v1132
    %v1859 = vunpack.c.l.b16 %v1133
    %v1860 = vunpack.c.l.b16 %v1134
    %v1861 = vunpack.c.l.b16 %v1135
    %v1862 = vunpack.c.l.b16 %v1136
    %v1863 = vunpack.c.l.b16 %v1137
    %v1864 = vunpack.c.l.b16 %v1138
    %v1865 = vunpack.c.l.b16 %v1139
    %v1866 = vunpack.c.l.b16 %v1140
    %v1867 = vunpack.c.l.b16 %v1141
    %v1868 = vunpack.c.l.b16 %v1142
    %v1869 = vunpack.c.l.b16 %v1143
    %v1870 = vunpack.c.l.b16 %v1144
    %v1871 = vunpack.c.l.b16 %v1145
    %v1872 = vunpack.c.l.b16 %v1146
    %v1873 = vunpack.c.l.b16 %v1147
    %v1874 = vunpack.c.l.b16 %v1148
    %v1875 = vunpack.c.l.b16 %v1149
    %v1876 = vunpack.c.l.b16 %v1150
    %v1877 = vunpack.c.l.b16 %v1151
    %v1878 = vunpack.c.l.b16 %v1152
    %v1879 = vunpack.c.l.b16 %v1153
    %v1880 = vunpack.c.l.b16 %v1154
    %v1881 = vunpack.c.l.b16 %v1155
    %v1882 = vunpack.c.l.b16 %v1156
    %v1883 = vunpack.c.l.b16 %v1157
    %v1884 = vunpack.c.l.b16 %v1158
    %v1885 = vunpack.c.l.b16 %v1159
    %v1886 = vunpack.c.l.b16 %v1160
    %v1887 = vunpack.c.l.b16 %v1161
    %v1888 = vunpack.c.l.b16 %v1162
    %v1889 = vunpack.c.l.b16 %v1163
    %v1890 = vunpack.c.l.b16 %v1164
    %v1891 = vunpack.c.l.b16 %v1165
    %v1892 = vunpack.c.l.b16 %v1166
    %v1893 = vunpack.c.l.b16 %v1167
    %v1894 = vunpack.c.l.b16 %v1168
    %v1895 = vunpack.c.l.b16 %v1169
    %v1896 = vunpack.c.l.b16 %v1170
    %v1897 = vunpack.c.l.b16 %v1171
    %v1898 = vunpack.c.l.b16 %v1172
    %v1899 = vunpack.c.l.b16 %v1173
    %v1900 = vunpack.c.l.b16 %v1174
    %v1901 = vunpack.c.l.b16 %v1175
    %v1902 = vunpack.c.l.b16 %v1176
    %v1903 = vunpack.c.l.b16 %v1177
    %v1904 = vunpack.c.l.b16 %v1178
    %v1905 = vunpack.c.l.b16 %v1179
    %v1906 = vunpack.c.l.b16 %v1180
    %v1907 = vunpack.c.l.b16 %v1181
    %v1908 = vunpack.c.l.b16 %v1182
    %v1909 = vunpack.c.l.b16 %v1183
    %v1910 = vunpack.c.l.b16 %v1184
    %v1911 = vunpack.c.l.b16 %v1185
    %v1912 = vunpack.c.l.b16 %v1186
    %v1913 = vunpack.c.l.b16 %v1187
    %v1914 = vunpack.c.l.b16 %v1188
    %v1915 = vunpack.c.l.b16 %v1189
    %v1916 = vunpack.c.l.b16 %v1190
    %v1917 = vunpack.c.l.b16 %v1191
    %v1918 = vunpack.c.l.b16 %v1192
    %v1919 = vunpack.c.l.b16 %v1193
    %v1920 = vunpack.c.l.b16 %v1194
    %v1921 = vunpack.c.l.b16 %v1195
    %v1922 = vunpack.c.l.b16 %v1196
    %v1923 = vunpack.c.l.b16 %v1197
    %v1924 = vunpack.c.l.b16 %v1198
    %v1925 = vunpack.c.l.b16 %v1199
    %v1926 = vunpack.c.l.b16 %v1200
    %v1927 = vunpack.c.l.b16 %v1201
    %v1928 = vunpack.c.l.b16 %v1202
    %v1929 = vunpack.c.l.b16 %v1203
    %v1930 = vunpack.c.l.b16 %v1204
    %v1931 = vunpack.c.l.b16 %v1205
    %v1932 = vunpack.c.l.b16 %v1206
    %v1933 = vunpack.c.l.b16 %v1207
    %v1934 = vunpack.c.l.b16 %v1208
    %v1935 = vunpack.c.l.b16 %v1209
    %v1936 = vunpack.c.l.b16 %v1210
    %v1937 = vunpack.c.l.b16 %v1211
    %v1938 = vunpack.c.l.b16 %v1212
    %v1939 = vunpack.c.l.b16 %v1213
    %v1940 = vunpack.c.l.b16 %v1214
    %v1941 = vunpack.c.l.b16 %v1215
    %v1942 = vunpack.c.l.b16 %v1216
    %v1943 = vunpack.c.l.b16 %v1217
    %v1944 = vunpack.c.l.b16 %v1218
    %v1945 = vunpack.c.l.b16 %v1219
    %v1946 = vunpack.c.l.b16 %v1220
    %v1947 = vunpack.c.l.b16 %v1221
    %v1948 = vunpack.c.l.b16 %v1222
    %v1949 = vunpack.c.l.b16 %v1223
    %v1950 = vunpack.c.l.b16 %v1224
    %v1951 = vunpack.c.l.b16 %v1225
    %v1952 = vunpack.c.l.b16 %v1226
    %v1953 = vunpack.c.l.b16 %v1227
    %v1954 = vunpack.c.l.b16 %v1228
    %v1955 = vunpack.c.l.b16 %v1229
    %v1956 = vunpack.c.l.b16 %v1230
    %v1957 = vunpack.c.l.b16 %v1231
    %v1958 = vunpack.c.l.b16 %v1232
    %v1959 = vunpack.c.l.b16 %v1233
    %v1960 = vunpack.c.l.b16 %v1234
    %v1961 = vunpack.c.l.b16 %v1235
    %v1962 = vunpack.c.l.b16 %v1236
    %v1963 = vunpack.c.l.b16 %v1237
    %v1964 = vunpack.c.l.b16 %v1238
    %v1965 = vunpack.c.l.b16 %v1239
    %v1966 = vunpack.c.l.b16 %v1240
    %v1967 = vunpack.c.l.b16 %v1241
    %v1968 = vunpack.c.l.b16 %v1242
    %v1969 = vunpack.c.l.b16 %v1243
    %v1970 = vunpack.c.l.b16 %v1244
    %v1971 = vunpack.c.l.b16 %v1245
    %v1972 = vunpack.c.l.b16 %v1246
    %v1973 = vunpack.c.l.b16 %v1247
    %v1974 = vunpack.c.l.b16 %v1248
    %v1975 = vunpack.c.l.b16 %v1249
    %v1976 = vunpack.c.l.b16 %v1250
    %v1977 = vunpack.c.l.b16 %v1251
    %v1978 = vunpack.c.l.b16 %v1252
    %v1979 = vunpack.c.l.b16 %v1253
    %v1980 = vunpack.c.l.b16 %v1254
    %v1981 = vunpack.c.l.b16 %v1255
    %v1982 = vunpack.c.l.b16 %v1256
    %v1983 = vunpack.c.l.b16 %v1257
    %v1984 = vunpack.c.l.b16 %v1258
    %v1985 = vunpack.c.l.b16 %v1259
    %v1986 = vunpack.c.l.b16 %v1260
    %v1987 = vunpack.c.l.b16 %v1261
    %v1988 = vunpack.c.l.b16 %v1262
    %v1989 = vunpack.c.l.b16 %v1263
    %v1990 = vunpack.c.l.b16 %v1264
    %v1991 = vunpack.c.l.b16 %v1265
    %v1992 = vunpack.c.l.b16 %v1266
    %v1993 = vunpack.c.l.b16 %v1267
    %v1994 = vunpack.c.l.b16 %v1268
    %v1995 = vunpack.c.l.b16 %v1269
    %v1996 = vunpack.c.l.b16 %v1270
    %v1997 = vunpack.c.l.b16 %v1271
    %v1998 = vunpack.c.l.b16 %v1272
    %v1999 = vunpack.c.l.b16 %v1273
    %v2000 = vunpack.c.l.b16 %v1274
    %v2001 = vunpack.c.l.b16 %v1275
    %v2002 = vunpack.c.l.b16 %v1276
    %v2003 = vunpack.c.l.b16 %v1277
    %v2004 = vunpack.c.l.b16 %v1278
    %v2005 = vunpack.c.l.b16 %v1279
    %v2006 = vunpack.c.l.b16 %v1280
    %v2007 = vunpack.c.l.b16 %v1281
    %v2008 = vunpack.c.l.b16 %v1282
    %v2009 = vunpack.c.l.b16 %v1283
    %v2010 = vunpack.c.l.b16 %v1284
    %v2011 = vunpack.c.l.b16 %v1285
    %v2012 = vunpack.c.l.b16 %v1286
    %v2013 = vunpack.c.l.b16 %v1287
    %v2014 = vunpack.c.l.b16 %v1288
    %v2015 = vunpack.c.l.b16 %v1289
    %v2016 = vunpack.c.l.b16 %v1290
    %v2017 = vunpack.c.l.b16 %v1291
    %v2018 = vunpack.c.l.b16 %v1292
    %v2019 = vunpack.c.l.b16 %v1293
    %v2020 = vunpack.c.l.b16 %v1294
    %v2021 = vunpack.c.l.b16 %v1295
    %v2022 = vunpack.c.l.b16 %v1296
    %v2023 = vunpack.c.l.b16 %v1297
    %v2024 = vunpack.c.l.b16 %v1298
    %v2025 = vunpack.c.l.b16 %v1299
    %v2026 = vunpack.c.l.b16 %v1300
    %v2027 = vunpack.c.l.b16 %v1301
    %v2028 = vunpack.c.l.b16 %v1302
    %v2029 = vunpack.c.l.b16 %v1303
    %v2030 = vunpack.c.l.b16 %v1304
    %v2031 = vunpack.c.l.b16 %v1305
    %v2032 = vunpack.c.l.b16 %v1306
    %v2033 = vunpack.c.l.b16 %v1307
    %v2034 = vunpack.c.l.b16 %v1308
    %v2035 = vunpack.c.l.b16 %v1309
    %v2036 = vunpack.c.l.b16 %v1310
    %v2037 = vunpack.c.l.b16 %v1311
    %v2038 = vunpack.c.l.b16 %v1312
    %v2039 = vunpack.c.l.b16 %v1313
    %v2040 = vunpack.c.l.b16 %v1314
    %v2041 = vunpack.c.l.b16 %v1315
    %v2042 = vunpack.c.l.b16 %v1316
    %v2043 = vunpack.c.l.b16 %v1317
    %v2044 = vunpack.c.l.b16 %v1318
    %v2045 = vunpack.c.l.b16 %v1319
    %v2046 = vunpack.c.l.b16 %v1320
    %v2047 = vunpack.c.l.b16 %v1321
    %v2048 = vunpack.c.l.b16 %v1322
    %v2049 = vunpack.c.l.b16 %v1323
    %v2050 = vunpack.c.l.b16 %v1324
    %v2051 = vunpack.c.l.b16 %v1325
    %v2052 = vunpack.c.l.b16 %v1326
    %v2053 = vunpack.c.l.b16 %v1327
    %v2054 = vunpack.c.l.b16 %v1328
    %v2055 = vunpack.c.l.b16 %v1329
    %v2056 = vunpack.c.l.b16 %v1330
    %v2057 = vunpack.c.l.b16 %v1331
    %v2058 = vunpack.c.l.b16 %v1332
    %v2059 = vunpack.c.l.b16 %v1333
    %v2060 = vunpack.c.l.b16 %v1334
    %v2061 = vunpack.c.l.b16 %v1335
    %v2062 = vunpack.c.l.b16 %v1336
    %v2063 = vunpack.c.l.b16 %v1337
    %v2064 = vunpack.c.l.b16 %v1338
    %v2065 = vunpack.c.l.b16 %v1339
    %v2066 = vunpack.c.l.b16 %v1340
    %v2067 = vunpack.c.l.b16 %v1341
    %v2068 = vunpack.c.l.b16 %v1342
    %v2069 = vunpack.c.l.b16 %v1343
    %v2070 = vpack.c.b16 %v1783, %v1782
    %v2071 = vpack.c.b16 %v1785, %v1784
    %v2072 = vpack.c.b16 %v1787, %v1786
    %v2073 = vpack.c.b16 %v1789, %v1788
    %v2074 = vpack.c.b16 %v1791, %v1790
    %v2075 = vpack.c.b16 %v1793, %v1792
    %v2076 = vpack.c.b16 %v1795, %v1794
    %v2077 = vpack.c.b16 %v1797, %v1796
    %v2078 = vpack.c.b16 %v1799, %v1798
    %v2079 = vpack.c.b16 %v1801, %v1800
    %v2080 = vpack.c.b16 %v1803, %v1802
    %v2081 = vpack.c.b16 %v1805, %v1804
    %v2082 = vpack.c.b16 %v1807, %v1806
    %v2083 = vpack.c.b16 %v1809, %v1808
    %v2084 = vpack.c.b16 %v1811, %v1810
    %v2085 = vpack.c.b16 %v1813, %v1812
    %v2086 = vpack.c.b16 %v1815, %v1814
    %v2087 = vpack.c.b16 %v1817, %v1816
    %v2088 = vpack.c.b16 %v1819, %v1818
    %v2089 = vpack.c.b16 %v1821, %v1820
    %v2090 = vpack.c.b16 %v1823, %v1822
    %v2091 = vpack.c.b16 %v1825, %v1824
    %v2092 = vpack.c.b16 %v1827, %v1826
    %v2093 = vpack.c.b16 %v1829, %v1828
    %v2094 = vpack.c.b16 %v1831, %v1830
    %v2095 = vpack.c.b16 %v1833, %v1832
    %v2096 = vpack.c.b16 %v1835, %v1834
    %v2097 = vpack.c.b16 %v1837, %v1836
    %v2098 = vpack.c.b16 %v1839, %v1838
    %v2099 = vpack.c.b16 %v1841, %v1840
    %v2100 = vpack.c.b16 %v1843, %v1842
    %v2101 = vpack.c.b16 %v1845, %v1844
    %v2102 = vpack.c.b16 %v1847, %v1846
    %v2103 = vpack.c.b16 %v1849, %v1848
    %v2104 = vpack.c.b16 %v1851, %v1850
    %v2105 = vpack.c.b16 %v1853, %v1852
    %v2106 = vpack.c.b16 %v1855, %v1854
    %v2107 = vpack.c.b16 %v1857, %v1856
    %v2108 = vpack.c.b16 %v1859, %v1858
    %v2109 = vpack.c.b16 %v1861, %v1860
    %v2110 = vpack.c.b16 %v1863, %v1862
    %v2111 = vpack.c.b16 %v1865, %v1864
    %v2112 = vpack.c.b16 %v1867, %v1866
    %v2113 = vpack.c.b16 %v1869, %v1868
    %v2114 = vpack.c.b16 %v1871, %v1870
    %v2115 = vpack.c.b16 %v1873, %v1872
    %v2116 = vpack.c.b16 %v1875, %v1874
    %v2117 = vpack.c.b16 %v1877, %v1876
    %v2118 = vpack.c.b16 %v1879, %v1878
    %v2119 = vpack.c.b16 %v1881, %v1880
    %v2120 = vpack.c.b16 %v1883, %v1882
    %v2121 = vpack.c.b16 %v1885, %v1884
    %v2122 = vpack.c.b16 %v1887, %v1886
    %v2123 = vpack.c.b16 %v1889, %v1888
    %v2124 = vpack.c.b16 %v1891, %v1890
    %v2125 = vpack.c.b16 %v1893, %v1892
    %v2126 = vpack.c.b16 %v1895, %v1894
    %v2127 = vpack.c.b16 %v1897, %v1896
    %v2128 = vpack.c.b16 %v1899, %v1898
    %v2129 = vpack.c.b16 %v1901, %v1900
    %v2130 = vpack.c.b16 %v1903, %v1902
    %v2131 = vpack.c.b16 %v1905, %v1904
    %v2132 = vpack.c.b16 %v1907, %v1906
    %v2133 = vpack.c.b16 %v1909, %v1908
    %v2134 = vpack.c.b16 %v1911, %v1910
    %v2135 = vpack.c.b16 %v1913, %v1912
    %v2136 = vpack.c.b16 %v1915, %v1914
    %v2137 = vpack.c.b16 %v1917, %v1916
    %v2138 = vpack.c.b16 %v1919, %v1918
    %v2139 = vpack.c.b16 %v1921, %v1920
    %v2140 = vpack.c.b16 %v1923, %v1922
    %v2141 = vpack.c.b16 %v1925, %v1924
    %v2142 = vpack.c.b16 %v1927, %v1926
    %v2143 = vpack.c.b16 %v1929, %v1928
    %v2144 = vpack.c.b16 %v1931, %v1930
    %v2145 = vpack.c.b16 %v1933, %v1932
    %v2146 = vpack.c.b16 %v1935, %v1934
    %v2147 = vpack.c.b16 %v1937, %v1936
    %v2148 = vpack.c.b16 %v1939, %v1938
    %v2149 = vpack.c.b16 %v1941, %v1940
    %v2150 = vpack.c.b16 %v1943, %v1942
    %v2151 = vpack.c.b16 %v1945, %v1944
    %v2152 = vpack.c.b16 %v1947, %v1946
    %v2153 = vpack.c.b16 %v1949, %v1948
    %v2154 = vpack.c.b16 %v1951, %v1950
    %v2155 = vpack.c.b16 %v1953, %v1952
    %v2156 = vpack.c.b16 %v1955, %v1954
    %v2157 = vpack.c.b16 %v1957, %v1956
    %v2158 = vpack.c.b16 %v1959, %v1958
    %v2159 = vpack.c.b16 %v1961, %v1960
    %v2160 = vpack.c.b16 %v1963, %v1962
    %v2161 = vpack.c.b16 %v1965, %v1964
    %v2162 = vpack.c.b16 %v1967, %v1966
    %v2163 = vpack.c.b16 %v1969, %v1968
    %v2164 = vpack.c.b16 %v1971, %v1970
    %v2165 = vpack.c.b16 %v1973, %v1972
    %v2166 = vpack.c.b16 %v1975, %v1974
    %v2167 = vpack.c.b16 %v1977, %v1976
    %v2168 = vpack.c.b16 %v1979, %v1978
    %v2169 = vpack.c.b16 %v1981, %v1980
    %v2170 = vpack.c.b16 %v1983, %v1982
    %v2171 = vpack.c.b16 %v1985, %v1984
    %v2172 = vpack.c.b16 %v1987, %v1986
    %v2173 = vpack.c.b16 %v1989, %v1988
    %v2174 = vpack.c.b16 %v1991, %v1990
    %v2175 = vpack.c.b16 %v1993, %v1992
    %v2176 = vpack.c.b16 %v1995, %v1994
    %v2177 = vpack.c.b16 %v1997, %v1996
    %v2178 = vpack.c.b16 %v1999, %v1998
    %v2179 = vpack.c.b16 %v2001, %v2000
    %v2180 = vpack.c.b16 %v2003, %v2002
    %v2181 = vpack.c.b16 %v2005, %v2004
    %v2182 = vpack.c.b16 %v2007, %v2006
    %v2183 = vpack.c.b16 %v2009, %v2008
    %v2184 = vpack.c.b16 %v2011, %v2010
    %v2185 = vpack.c.b16 %v2013, %v2012
    %v2186 = vpack.c.b16 %v2015, %v2014
    %v2187 = vpack.c.b16 %v2017, %v2016
    %v2188 = vpack.c.b16 %v2019, %v2018
    %v2189 = vpack.c.b16 %v2021, %v2020
    %v2190 = vpack.c.b16 %v2023, %v2022
    %v2191 = vpack.c.b16 %v2025, %v2024
    %v2192 = vpack.c.b16 %v2027, %v2026
    %v2193 = vpack.c.b16 %v2029, %v2028
    %v2194 = vpack.c.b16 %v2031, %v2030
    %v2195 = vpack.c.b16 %v2033, %v2032
    %v2196 = vpack.c.b16 %v2035, %v2034
    %v2197 = vpack.c.b16 %v2037, %v2036
    %v2198 = vpack.c.b16 %v2039, %v2038
    %v2199 = vpack.c.b16 %v2041, %v2040
    %v2200 = vpack.c.b16 %v2043, %v2042
    %v2201 = vpack.c.b16 %v2045, %v2044
    %v2202 = vpack.c.b16 %v2047, %v2046
    %v2203 = vpack.c.b16 %v2049, %v2048
    %v2204 = vpack.c.b16 %v2051, %v2050
    %v2205 = vpack.c.b16 %v2053, %v2052
    %v2206 = vpack.c.b16 %v2055, %v2054
    %v2207 = vpack.c.b16 %v2057, %v2056
    %v2208 = vpack.c.b16 %v2059, %v2058
    %v2209 = vpack.c.b16 %v2061, %v2060
    %v2210 = vpack.c.b16 %v2063, %v2062
    %v2211 = vpack.c.b16 %v2065, %v2064
    %v2212 = vpack.c.b16 %v2067, %v2066
    %v2213 = vpack.c.b16 %v2069, %v2068
    %2358 = vmatprep.subr.bf16.mxu0 0
    %2359 = vmatpush1.bf16.msra.mxu0 %v2070
    %2360 = vmatprep.subr.bf16.mxu0 0
    %2361 = vmatpush1.bf16.msra.mxu0 %v2071
    %2362 = vmatprep.subr.bf16.mxu0 0
    %2363 = vmatpush1.bf16.msra.mxu0 %v2072
    %2364 = vmatprep.subr.bf16.mxu0 0
    %2365 = vmatpush1.bf16.msra.mxu0 %v2073
    %2366 = vmatprep.subr.bf16.mxu0 0
    %2367 = vmatpush1.bf16.msra.mxu0 %v2074
    %2368 = vmatprep.subr.bf16.mxu0 0
    %2369 = vmatpush1.bf16.msra.mxu0 %v2075
    %2370 = vmatprep.subr.bf16.mxu0 0
    %2371 = vmatpush1.bf16.msra.mxu0 %v2076
    %2372 = vmatprep.subr.bf16.mxu0 0
    %2373 = vmatpush1.bf16.msra.mxu0 %v2077
    %2374 = vmatprep.subr.bf16.mxu0 0
    %2375 = vmatpush1.bf16.msra.mxu0 %v2078
    %2376 = vmatprep.subr.bf16.mxu0 0
    %2377 = vmatpush1.bf16.msra.mxu0 %v2079
    %2378 = vmatprep.subr.bf16.mxu0 0
    %2379 = vmatpush1.bf16.msra.mxu0 %v2080
    %2380 = vmatprep.subr.bf16.mxu0 0
    %2381 = vmatpush1.bf16.msra.mxu0 %v2081
    %2382 = vmatprep.subr.bf16.mxu0 0
    %2383 = vmatpush1.bf16.msra.mxu0 %v2082
    %2384 = vmatprep.subr.bf16.mxu0 0
    %2385 = vmatpush1.bf16.msra.mxu0 %v2083
    %2386 = vmatprep.subr.bf16.mxu0 0
    %2387 = vmatpush1.bf16.msra.mxu0 %v2084
    %2388 = vmatprep.subr.bf16.mxu0 0
    %2389 = vmatpush1.bf16.msra.mxu0 %v2085
    %2390 = vmatprep.mubr.bf16.mxu0 %v1393
    %2391 = vmatmul.mubr.bf16.gmra.mrb[0].mxu0 %v1379
    %v2392 = vpop.f32.mrb[0].mxu0
    %v2393 = vadd.f32 %v1352, %v2392
    %v2394 = vpop.f32.mrb[0].mxu0
    %v2395 = vpop.f32.mrb[0].mxu0
    %v2396 = vpop.f32.mrb[0].mxu0
    %2397 = vdwg.mxu0
    %2398 = vmatprep.subr.bf16.mxu0 0
    %2399 = vmatpush1.bf16.msra.mxu0 %v2086
    %2400 = vmatprep.subr.bf16.mxu0 0
    %2401 = vmatpush1.bf16.msra.mxu0 %v2087
    %2402 = vmatprep.subr.bf16.mxu0 0
    %2403 = vmatpush1.bf16.msra.mxu0 %v2088
    %2404 = vmatprep.subr.bf16.mxu0 0
    %2405 = vmatpush1.bf16.msra.mxu0 %v2089
    %2406 = vmatprep.subr.bf16.mxu0 0
    %2407 = vmatpush1.bf16.msra.mxu0 %v2090
    %2408 = vmatprep.subr.bf16.mxu0 0
    %2409 = vmatpush1.bf16.msra.mxu0 %v2091
    %2410 = vmatprep.subr.bf16.mxu0 0
    %2411 = vmatpush1.bf16.msra.mxu0 %v2092
    %2412 = vmatprep.subr.bf16.mxu0 0
    %2413 = vmatpush1.bf16.msra.mxu0 %v2093
    %2414 = vmatprep.subr.bf16.mxu0 0
    %2415 = vmatpush1.bf16.msra.mxu0 %v2094
    %2416 = vmatprep.subr.bf16.mxu0 0
    %2417 = vmatpush1.bf16.msra.mxu0 %v2095
    %2418 = vmatprep.subr.bf16.mxu0 0
    %2419 = vmatpush1.bf16.msra.mxu0 %v2096
    %2420 = vmatprep.subr.bf16.mxu0 0
    %2421 = vmatpush1.bf16.msra.mxu0 %v2097
    %2422 = vmatprep.subr.bf16.mxu0 0
    %2423 = vmatpush1.bf16.msra.mxu0 %v2098
    %2424 = vmatprep.subr.bf16.mxu0 0
    %2425 = vmatpush1.bf16.msra.mxu0 %v2099
    %2426 = vmatprep.subr.bf16.mxu0 0
    %2427 = vmatpush1.bf16.msra.mxu0 %v2100
    %2428 = vmatprep.subr.bf16.mxu0 0
    %2429 = vmatpush1.bf16.msra.mxu0 %v2101
    %2430 = vmatprep.mubr.bf16.mxu0 %v1403
    %2431 = vmatmul.mubr.bf16.gmra.mrb[0].mxu0 %v1401
    %v2432 = vpop.f32.mrb[0].mxu0
    %v2433 = vadd.f32 %v2393, %v2432
    %v2434 = vpop.f32.mrb[0].mxu0
    %v2435 = vpop.f32.mrb[0].mxu0
    %v2436 = vpop.f32.mrb[0].mxu0
    %2437 = vdwg.mxu0
    %2438 = vmatprep.subr.bf16.mxu0 0
    %2439 = vmatpush1.bf16.msra.mxu0 %v2102
    %2440 = vmatprep.subr.bf16.mxu0 0
    %2441 = vmatpush1.bf16.msra.mxu0 %v2103
    %2442 = vmatprep.subr.bf16.mxu0 0
    %2443 = vmatpush1.bf16.msra.mxu0 %v2104
    %2444 = vmatprep.subr.bf16.mxu0 0
    %2445 = vmatpush1.bf16.msra.mxu0 %v2105
    %2446 = vmatprep.subr.bf16.mxu0 0
    %2447 = vmatpush1.bf16.msra.mxu0 %v2106
    %2448 = vmatprep.subr.bf16.mxu0 0
    %2449 = vmatpush1.bf16.msra.mxu0 %v2107
    %2450 = vmatprep.subr.bf16.mxu0 0
    %2451 = vmatpush1.bf16.msra.mxu0 %v2108
    %2452 = vmatprep.subr.bf16.mxu0 0
    %2453 = vmatpush1.bf16.msra.mxu0 %v2109
    %2454 = vmatprep.subr.bf16.mxu0 0
    %2455 = vmatpush1.bf16.msra.mxu0 %v2110
    %2456 = vmatprep.subr.bf16.mxu0 0
    %2457 = vmatpush1.bf16.msra.mxu0 %v2111
    %2458 = vmatprep.subr.bf16.mxu0 0
    %2459 = vmatpush1.bf16.msra.mxu0 %v2112
    %2460 = vmatprep.subr.bf16.mxu0 0
    %2461 = vmatpush1.bf16.msra.mxu0 %v2113
    %2462 = vmatprep.subr.bf16.mxu0 0
    %2463 = vmatpush1.bf16.msra.mxu0 %v2114
    %2464 = vmatprep.subr.bf16.mxu0 0
    %2465 = vmatpush1.bf16.msra.mxu0 %v2115
    %2466 = vmatprep.subr.bf16.mxu0 0
    %2467 = vmatpush1.bf16.msra.mxu0 %v2116
    %2468 = vmatprep.subr.bf16.mxu0 0
    %2469 = vmatpush1.bf16.msra.mxu0 %v2117
    %2470 = vmatprep.mubr.bf16.mxu0 %v1400
    %2471 = vmatmul.mubr.bf16.gmra.mrb[0].mxu0 %v1386
    %v2472 = vpop.f32.mrb[0].mxu0
    %v2473 = vadd.f32 %v2433, %v2472
    %v2474 = vpop.f32.mrb[0].mxu0
    %v2475 = vpop.f32.mrb[0].mxu0
    %v2476 = vpop.f32.mrb[0].mxu0
    %2477 = vdwg.mxu0
    %2478 = vmatprep.subr.bf16.mxu0 0
    %2479 = vmatpush1.bf16.msra.mxu0 %v2118
    %2480 = vmatprep.subr.bf16.mxu0 0
    %2481 = vmatpush1.bf16.msra.mxu0 %v2119
    %2482 = vmatprep.subr.bf16.mxu0 0
    %2483 = vmatpush1.bf16.msra.mxu0 %v2120
    %2484 = vmatprep.subr.bf16.mxu0 0
    %2485 = vmatpush1.bf16.msra.mxu0 %v2121
    %2486 = vmatprep.subr.bf16.mxu0 0
    %2487 = vmatpush1.bf16.msra.mxu0 %v2122
    %2488 = vmatprep.subr.bf16.mxu0 0
    %2489 = vmatpush1.bf16.msra.mxu0 %v2123
    %2490 = vmatprep.subr.bf16.mxu0 0
    %2491 = vmatpush1.bf16.msra.mxu0 %v2124
    %2492 = vmatprep.subr.bf16.mxu0 0
    %2493 = vmatpush1.bf16.msra.mxu0 %v2125
    %2494 = vmatprep.subr.bf16.mxu0 0
    %2495 = vmatpush1.bf16.msra.mxu0 %v2126
    %2496 = vmatprep.subr.bf16.mxu0 0
    %2497 = vmatpush1.bf16.msra.mxu0 %v2127
    %2498 = vmatprep.subr.bf16.mxu0 0
    %2499 = vmatpush1.bf16.msra.mxu0 %v2128
    %2500 = vmatprep.subr.bf16.mxu0 0
    %2501 = vmatpush1.bf16.msra.mxu0 %v2129
    %2502 = vmatprep.subr.bf16.mxu0 0
    %2503 = vmatpush1.bf16.msra.mxu0 %v2130
    %2504 = vmatprep.subr.bf16.mxu0 0
    %2505 = vmatpush1.bf16.msra.mxu0 %v2131
    %2506 = vmatprep.subr.bf16.mxu0 0
    %2507 = vmatpush1.bf16.msra.mxu0 %v2132
    %2508 = vmatprep.subr.bf16.mxu0 0
    %2509 = vmatpush1.bf16.msra.mxu0 %v2133
    %2510 = vmatprep.mubr.bf16.mxu0 %v1404
    %2511 = vmatmul.mubr.bf16.gmra.mrb[0].mxu0 %v1402
    %v2512 = vpop.f32.mrb[0].mxu0
    %v2513 = vadd.f32 %v2473, %v2512
    %v2514 = vpop.f32.mrb[0].mxu0
    %v2515 = vpop.f32.mrb[0].mxu0
    %v2516 = vpop.f32.mrb[0].mxu0
    %2517 = vdwg.mxu0
    %2518 = vmatprep.subr.bf16.mxu0 0
    %2519 = vmatpush1.bf16.msra.mxu0 %v2134
    %2520 = vmatprep.subr.bf16.mxu0 0
    %2521 = vmatpush1.bf16.msra.mxu0 %v2135
    %2522 = vmatprep.subr.bf16.mxu0 0
    %2523 = vmatpush1.bf16.msra.mxu0 %v2136
    %2524 = vmatprep.subr.bf16.mxu0 0
    %2525 = vmatpush1.bf16.msra.mxu0 %v2137
    %2526 = vmatprep.subr.bf16.mxu0 0
    %2527 = vmatpush1.bf16.msra.mxu0 %v2138
    %2528 = vmatprep.subr.bf16.mxu0 0
    %2529 = vmatpush1.bf16.msra.mxu0 %v2139
    %2530 = vmatprep.subr.bf16.mxu0 0
    %2531 = vmatpush1.bf16.msra.mxu0 %v2140
    %2532 = vmatprep.subr.bf16.mxu0 0
    %2533 = vmatpush1.bf16.msra.mxu0 %v2141
    %2534 = vmatprep.subr.bf16.mxu0 0
    %2535 = vmatpush1.bf16.msra.mxu0 %v2142
    %2536 = vmatprep.subr.bf16.mxu0 0
    %2537 = vmatpush1.bf16.msra.mxu0 %v2143
    %2538 = vmatprep.subr.bf16.mxu0 0
    %2539 = vmatpush1.bf16.msra.mxu0 %v2144
    %2540 = vmatprep.subr.bf16.mxu0 0
    %2541 = vmatpush1.bf16.msra.mxu0 %v2145
    %2542 = vmatprep.subr.bf16.mxu0 0
    %2543 = vmatpush1.bf16.msra.mxu0 %v2146
    %2544 = vmatprep.subr.bf16.mxu0 0
    %2545 = vmatpush1.bf16.msra.mxu0 %v2147
    %2546 = vmatprep.subr.bf16.mxu0 0
    %2547 = vmatpush1.bf16.msra.mxu0 %v2148
    %2548 = vmatprep.subr.bf16.mxu0 0
    %2549 = vmatpush1.bf16.msra.mxu0 %v2149
    %2550 = vmatprep.mubr.bf16.mxu0 %v1442
    %2551 = vmatmul.mubr.bf16.gmra.mrb[0].mxu0 %v1428
    %v2552 = vpop.f32.mrb[0].mxu0
    %v2553 = vadd.f32 %v2513, %v2552
    %v2554 = vpop.f32.mrb[0].mxu0
    %v2555 = vpop.f32.mrb[0].mxu0
    %v2556 = vpop.f32.mrb[0].mxu0
    %2557 = vdwg.mxu0
    %2558 = vmatprep.subr.bf16.mxu0 0
    %2559 = vmatpush1.bf16.msra.mxu0 %v2150
    %2560 = vmatprep.subr.bf16.mxu0 0
    %2561 = vmatpush1.bf16.msra.mxu0 %v2151
    %2562 = vmatprep.subr.bf16.mxu0 0
    %2563 = vmatpush1.bf16.msra.mxu0 %v2152
    %2564 = vmatprep.subr.bf16.mxu0 0
    %2565 = vmatpush1.bf16.msra.mxu0 %v2153
    %2566 = vmatprep.subr.bf16.mxu0 0
    %2567 = vmatpush1.bf16.msra.mxu0 %v2154
    %2568 = vmatprep.subr.bf16.mxu0 0
    %2569 = vmatpush1.bf16.msra.mxu0 %v2155
    %2570 = vmatprep.subr.bf16.mxu0 0
    %2571 = vmatpush1.bf16.msra.mxu0 %v2156
    %2572 = vmatprep.subr.bf16.mxu0 0
    %2573 = vmatpush1.bf16.msra.mxu0 %v2157
    %2574 = vmatprep.subr.bf16.mxu0 0
    %2575 = vmatpush1.bf16.msra.mxu0 %v2158
    %2576 = vmatprep.subr.bf16.mxu0 0
    %2577 = vmatpush1.bf16.msra.mxu0 %v2159
    %2578 = vmatprep.subr.bf16.mxu0 0
    %2579 = vmatpush1.bf16.msra.mxu0 %v2160
    %2580 = vmatprep.subr.bf16.mxu0 0
    %2581 = vmatpush1.bf16.msra.mxu0 %v2161
    %2582 = vmatprep.subr.bf16.mxu0 0
    %2583 = vmatpush1.bf16.msra.mxu0 %v2162
    %2584 = vmatprep.subr.bf16.mxu0 0
    %2585 = vmatpush1.bf16.msra.mxu0 %v2163
    %2586 = vmatprep.subr.bf16.mxu0 0
    %2587 = vmatpush1.bf16.msra.mxu0 %v2164
    %2588 = vmatprep.subr.bf16.mxu0 0
    %2589 = vmatpush1.bf16.msra.mxu0 %v2165
    %2590 = vmatprep.mubr.bf16.mxu0 %v1452
    %2591 = vmatmul.mubr.bf16.gmra.mrb[0].mxu0 %v1450
    %v2592 = vpop.f32.mrb[0].mxu0
    %v2593 = vadd.f32 %v2553, %v2592
    %v2594 = vpop.f32.mrb[0].mxu0
    %v2595 = vpop.f32.mrb[0].mxu0
    %v2596 = vpop.f32.mrb[0].mxu0
    %2597 = vdwg.mxu0
    %2598 = vmatprep.subr.bf16.mxu0 0
    %2599 = vmatpush1.bf16.msra.mxu0 %v2166
    %2600 = vmatprep.subr.bf16.mxu0 0
    %2601 = vmatpush1.bf16.msra.mxu0 %v2167
    %2602 = vmatprep.subr.bf16.mxu0 0
    %2603 = vmatpush1.bf16.msra.mxu0 %v2168
    %2604 = vmatprep.subr.bf16.mxu0 0
    %2605 = vmatpush1.bf16.msra.mxu0 %v2169
    %2606 = vmatprep.subr.bf16.mxu0 0
    %2607 = vmatpush1.bf16.msra.mxu0 %v2170
    %2608 = vmatprep.subr.bf16.mxu0 0
    %2609 = vmatpush1.bf16.msra.mxu0 %v2171
    %2610 = vmatprep.subr.bf16.mxu0 0
    %2611 = vmatpush1.bf16.msra.mxu0 %v2172
    %2612 = vmatprep.subr.bf16.mxu0 0
    %2613 = vmatpush1.bf16.msra.mxu0 %v2173
    %2614 = vmatprep.subr.bf16.mxu0 0
    %2615 = vmatpush1.bf16.msra.mxu0 %v2174
    %2616 = vmatprep.subr.bf16.mxu0 0
    %2617 = vmatpush1.bf16.msra.mxu0 %v2175
    %2618 = vmatprep.subr.bf16.mxu0 0
    %2619 = vmatpush1.bf16.msra.mxu0 %v2176
    %2620 = vmatprep.subr.bf16.mxu0 0
    %2621 = vmatpush1.bf16.msra.mxu0 %v2177
    %2622 = vmatprep.subr.bf16.mxu0 0
    %2623 = vmatpush1.bf16.msra.mxu0 %v2178
    %2624 = vmatprep.subr.bf16.mxu0 0
    %2625 = vmatpush1.bf16.msra.mxu0 %v2179
    %2626 = vmatprep.subr.bf16.mxu0 0
    %2627 = vmatpush1.bf16.msra.mxu0 %v2180
    %2628 = vmatprep.subr.bf16.mxu0 0
    %2629 = vmatpush1.bf16.msra.mxu0 %v2181
    %2630 = vmatprep.mubr.bf16.mxu0 %v1449
    %2631 = vmatmul.mubr.bf16.gmra.mrb[0].mxu0 %v1435
    %v2632 = vpop.f32.mrb[0].mxu0
    %v2633 = vadd.f32 %v2593, %v2632
    %v2634 = vpop.f32.mrb[0].mxu0
    %v2635 = vpop.f32.mrb[0].mxu0
    %v2636 = vpop.f32.mrb[0].mxu0
    %2637 = vdwg.mxu0
    %2638 = vmatprep.subr.bf16.mxu0 0
    %2639 = vmatpush1.bf16.msra.mxu0 %v2182
    %2640 = vmatprep.subr.bf16.mxu0 0
    %2641 = vmatpush1.bf16.msra.mxu0 %v2183
    %2642 = vmatprep.subr.bf16.mxu0 0
    %2643 = vmatpush1.bf16.msra.mxu0 %v2184
    %2644 = vmatprep.subr.bf16.mxu0 0
    %2645 = vmatpush1.bf16.msra.mxu0 %v2185
    %2646 = vmatprep.subr.bf16.mxu0 0
    %2647 = vmatpush1.bf16.msra.mxu0 %v2186
    %2648 = vmatprep.subr.bf16.mxu0 0
    %2649 = vmatpush1.bf16.msra.mxu0 %v2187
    %2650 = vmatprep.subr.bf16.mxu0 0
    %2651 = vmatpush1.bf16.msra.mxu0 %v2188
    %2652 = vmatprep.subr.bf16.mxu0 0
    %2653 = vmatpush1.bf16.msra.mxu0 %v2189
    %2654 = vmatprep.subr.bf16.mxu0 0
    %2655 = vmatpush1.bf16.msra.mxu0 %v2190
    %2656 = vmatprep.subr.bf16.mxu0 0
    %2657 = vmatpush1.bf16.msra.mxu0 %v2191
    %2658 = vmatprep.subr.bf16.mxu0 0
    %2659 = vmatpush1.bf16.msra.mxu0 %v2192
    %2660 = vmatprep.subr.bf16.mxu0 0
    %2661 = vmatpush1.bf16.msra.mxu0 %v2193
    %2662 = vmatprep.subr.bf16.mxu0 0
    %2663 = vmatpush1.bf16.msra.mxu0 %v2194
    %2664 = vmatprep.subr.bf16.mxu0 0
    %2665 = vmatpush1.bf16.msra.mxu0 %v2195
    %2666 = vmatprep.subr.bf16.mxu0 0
    %2667 = vmatpush1.bf16.msra.mxu0 %v2196
    %2668 = vmatprep.subr.bf16.mxu0 0
    %2669 = vmatpush1.bf16.msra.mxu0 %v2197
    %2670 = vmatprep.mubr.bf16.mxu0 %v1453
    %2671 = vmatmul.mubr.bf16.gmra.mrb[0].mxu0 %v1451
    %v2672 = vpop.f32.mrb[0].mxu0
    %v2673 = vadd.f32 %v2633, %v2672
    %v2674 = vpop.f32.mrb[0].mxu0
    %v2675 = vpop.f32.mrb[0].mxu0
    %v2676 = vpop.f32.mrb[0].mxu0
    %2677 = vdwg.mxu0
    %2678 = vmatprep.subr.bf16.mxu0 0
    %2679 = vmatpush1.bf16.msra.mxu0 %v2198
    %2680 = vmatprep.subr.bf16.mxu0 0
    %2681 = vmatpush1.bf16.msra.mxu0 %v2199
    %2682 = vmatprep.subr.bf16.mxu0 0
    %2683 = vmatpush1.bf16.msra.mxu0 %v2200
    %2684 = vmatprep.subr.bf16.mxu0 0
    %2685 = vmatpush1.bf16.msra.mxu0 %v2201
    %2686 = vmatprep.subr.bf16.mxu0 0
    %2687 = vmatpush1.bf16.msra.mxu0 %v2202
    %2688 = vmatprep.subr.bf16.mxu0 0
    %2689 = vmatpush1.bf16.msra.mxu0 %v2203
    %2690 = vmatprep.subr.bf16.mxu0 0
    %2691 = vmatpush1.bf16.msra.mxu0 %v2204
    %2692 = vmatprep.subr.bf16.mxu0 0
    %2693 = vmatpush1.bf16.msra.mxu0 %v2205
    %2694 = vmatprep.subr.bf16.mxu0 0
    %2695 = vmatpush1.bf16.msra.mxu0 %v2206
    %2696 = vmatprep.subr.bf16.mxu0 0
    %2697 = vmatpush1.bf16.msra.mxu0 %v2207
    %2698 = vmatprep.subr.bf16.mxu0 0
    %2699 = vmatpush1.bf16.msra.mxu0 %v2208
    %2700 = vmatprep.subr.bf16.mxu0 0
    %2701 = vmatpush1.bf16.msra.mxu0 %v2209
    %2702 = vmatprep.subr.bf16.mxu0 0
    %2703 = vmatpush1.bf16.msra.mxu0 %v2210
    %2704 = vmatprep.subr.bf16.mxu0 0
    %2705 = vmatpush1.bf16.msra.mxu0 %v2211
    %2706 = vmatprep.subr.bf16.mxu0 0
    %2707 = vmatpush1.bf16.msra.mxu0 %v2212
    %2708 = vmatprep.subr.bf16.mxu0 0
    %2709 = vmatpush1.bf16.msra.mxu0 %v2213
    %2710 = vmatprep.mubr.bf16.mxu0 %v1475
    %2711 = vmatmul.mubr.bf16.gmra.mrb[0].mxu0 %v1468
    %v2712 = vpop.f32.mrb[0].mxu0
    %v2713 = vadd.f32 %v2673, %v2712
    %v2714 = vpop.f32.mrb[0].mxu0
    %v2715 = vpop.f32.mrb[0].mxu0
    %v2716 = vpop.f32.mrb[0].mxu0
    %2717 = vdwg.mxu0
    %v2718 = vmax.f32 %v2713, 0.0
    %v2719 = vld [vmem:[%s4] sm:$0xf]
    %v2720 = vld [vmem:[%s4 + $0x4] sm:$0xf]
    %v2721 = vld [vmem:[%s4 + $0x8] sm:$0xf]
    %v2722 = vld [vmem:[%s4 + $0xc] sm:$0xf]
    %v2723 = vld [vmem:[%s4 + $0x10] sm:$0xf]
    %v2724 = vld [vmem:[%s4 + $0x14] sm:$0xf]
    %v2725 = vld [vmem:[%s4 + $0x18] sm:$0xf]
    %v2726 = vld [vmem:[%s4 + $0x1c] sm:$0xf]
    %v2727 = vld [vmem:[%s4 + $0x20] sm:$0xf]
    %v2728 = vld [vmem:[%s4 + $0x24] sm:$0xf]
    %v2729 = vld [vmem:[%s4 + $0x28] sm:$0xf]
    %v2730 = vld [vmem:[%s4 + $0x2c] sm:$0xf]
    %v2731 = vld [vmem:[%s4 + $0x30] sm:$0xf]
    %v2732 = vld [vmem:[%s4 + $0x34] sm:$0xf]
    %v2733 = vld [vmem:[%s4 + $0x38] sm:$0xf]
    %v2734 = vld [vmem:[%s4 + $0x3c] sm:$0xf]
    %v2735 = vld [vmem:[%s4 + $0x40] sm:$0xf]
    %v2736 = vld [vmem:[%s4 + $0x44] sm:$0xf]
    %v2737 = vld [vmem:[%s4 + $0x48] sm:$0xf]
    %v2738 = vld [vmem:[%s4 + $0x4c] sm:$0xf]
    %v2739 = vld [vmem:[%s4 + $0x50] sm:$0x1]
    %v2740 = vunpack.c.l.bf16 %v2739
    %v2741 = vpack.c.bf16 %v2718, %v2718
    %v2742 = vlaneseq
    %v2743 = vshrl.u32 %v2742, 7
    %v2744 = vsub.s32 0, %v2743
    %v2745 = vrot.slane %v2740, %v2744
    %v2750 = vunpack.c.l.b16 %v2735
    %v2751 = vunpack.c.l.b16 %v2736
    %v2752 = vunpack.c.l.b16 %v2737
    %v2753 = vunpack.c.l.b16 %v2738
    %v2754 = vpack.c.b16 %v2751, %v2750
    %v2755 = vpack.c.b16 %v2753, %v2752
    %v2759 = vsel %vm552, %v2741, 0
    %2761 = vmatprep.subr.bf16.mxu0 0
    %2762 = vmatpush1.bf16.msra.mxu0 %v2754
    %2763 = vmatprep.subr.bf16.mxu0 0
    %2764 = vmatpush1.bf16.msra.mxu0 %v2755
    %2765 = vmatprep.subr.bf16.mxu0 0
    %2766 = vmatpush1.bf16.msra.mxu0 0
    %2767 = vmatprep.subr.bf16.mxu0 0
    %2768 = vmatpush1.bf16.msra.mxu0 0
    %2769 = vmatprep.subr.bf16.mxu0 0
    %2770 = vmatpush1.bf16.msra.mxu0 0
    %2771 = vmatprep.subr.bf16.mxu0 0
    %2772 = vmatpush1.bf16.msra.mxu0 0
    %2773 = vmatprep.subr.bf16.mxu0 0
    %2774 = vmatpush1.bf16.msra.mxu0 0
    %2775 = vmatprep.subr.bf16.mxu0 0
    %2776 = vmatpush1.bf16.msra.mxu0 0
    %2777 = vmatprep.subr.bf16.mxu0 0
    %2778 = vmatpush1.bf16.msra.mxu0 0
    %2779 = vmatprep.subr.bf16.mxu0 0
    %2780 = vmatpush1.bf16.msra.mxu0 0
    %2781 = vmatprep.subr.bf16.mxu0 0
    %2782 = vmatpush1.bf16.msra.mxu0 0
    %2783 = vmatprep.subr.bf16.mxu0 0
    %2784 = vmatpush1.bf16.msra.mxu0 0
    %2785 = vmatprep.subr.bf16.mxu0 0
    %2786 = vmatpush1.bf16.msra.mxu0 0
    %2787 = vmatprep.subr.bf16.mxu0 0
    %2788 = vmatpush1.bf16.msra.mxu0 0
    %2789 = vmatprep.subr.bf16.mxu0 0
    %2790 = vmatpush1.bf16.msra.mxu0 0
    %2791 = vmatprep.subr.bf16.mxu0 0
    %2792 = vmatpush1.bf16.msra.mxu0 0
    %2793 = vmatprep.mubr.bf16.mxu0 0
    %2794 = vmatmul.mubr.bf16.gmra.mrb[0].mxu0 %v2759
    %v2795 = vpop.f32.mrb[0].mxu0
    %v2796 = vadd.f32 %v2745, %v2795
    %v2797 = vpop.f32.mrb[0].mxu0
    %v2798 = vpop.f32.mrb[0].mxu0
    %v2799 = vpop.f32.mrb[0].mxu0
    %2800 = vdwg.mxu0
    %v2801 = vmax.f32 %v2796, 0.0
    %v2802 = vpack.c.bf16 %v2801, %v2801
    %v2803 = vlaneseq
    %v2804 = vshrl.u32 %v2803, 7
    %v2805 = vsub.s32 1, %v2804
    %v2806 = vrot.slane %v2740, %v2805
    %v2823 = vunpack.c.l.b16 %v2719
    %v2824 = vunpack.c.l.b16 %v2720
    %v2825 = vunpack.c.l.b16 %v2721
    %v2826 = vunpack.c.l.b16 %v2722
    %v2827 = vunpack.c.l.b16 %v2723
    %v2828 = vunpack.c.l.b16 %v2724
    %v2829 = vunpack.c.l.b16 %v2725
    %v2830 = vunpack.c.l.b16 %v2726
    %v2831 = vunpack.c.l.b16 %v2727
    %v2832 = vunpack.c.l.b16 %v2728
    %v2833 = vunpack.c.l.b16 %v2729
    %v2834 = vunpack.c.l.b16 %v2730
    %v2835 = vunpack.c.l.b16 %v2731
    %v2836 = vunpack.c.l.b16 %v2732
    %v2837 = vunpack.c.l.b16 %v2733
    %v2838 = vunpack.c.l.b16 %v2734
    %v2839 = vpack.c.b16 %v2824, %v2823
    %v2840 = vpack.c.b16 %v2826, %v2825
    %v2841 = vpack.c.b16 %v2828, %v2827
    %v2842 = vpack.c.b16 %v2830, %v2829
    %v2843 = vpack.c.b16 %v2832, %v2831
    %v2844 = vpack.c.b16 %v2834, %v2833
    %v2845 = vpack.c.b16 %v2836, %v2835
    %v2846 = vpack.c.b16 %v2838, %v2837
    %2855 = vmatprep.subr.bf16.mxu0 0
    %2856 = vmatpush1.bf16.msra.mxu0 %v2839
    %2857 = vmatprep.subr.bf16.mxu0 0
    %2858 = vmatpush1.bf16.msra.mxu0 %v2840
    %2859 = vmatprep.subr.bf16.mxu0 0
    %2860 = vmatpush1.bf16.msra.mxu0 %v2841
    %2861 = vmatprep.subr.bf16.mxu0 0
    %2862 = vmatpush1.bf16.msra.mxu0 %v2842
    %2863 = vmatprep.subr.bf16.mxu0 0
    %2864 = vmatpush1.bf16.msra.mxu0 %v2843
    %2865 = vmatprep.subr.bf16.mxu0 0
    %2866 = vmatpush1.bf16.msra.mxu0 %v2844
    %2867 = vmatprep.subr.bf16.mxu0 0
    %2868 = vmatpush1.bf16.msra.mxu0 %v2845
    %2869 = vmatprep.subr.bf16.mxu0 0
    %2870 = vmatpush1.bf16.msra.mxu0 %v2846
    %2871 = vmatprep.subr.bf16.mxu0 0
    %2872 = vmatpush1.bf16.msra.mxu0 0
    %2873 = vmatprep.subr.bf16.mxu0 0
    %2874 = vmatpush1.bf16.msra.mxu0 0
    %2875 = vmatprep.subr.bf16.mxu0 0
    %2876 = vmatpush1.bf16.msra.mxu0 0
    %2877 = vmatprep.subr.bf16.mxu0 0
    %2878 = vmatpush1.bf16.msra.mxu0 0
    %2879 = vmatprep.subr.bf16.mxu0 0
    %2880 = vmatpush1.bf16.msra.mxu0 0
    %2881 = vmatprep.subr.bf16.mxu0 0
    %2882 = vmatpush1.bf16.msra.mxu0 0
    %2883 = vmatprep.subr.bf16.mxu0 0
    %2884 = vmatpush1.bf16.msra.mxu0 0
    %2885 = vmatprep.subr.bf16.mxu0 0
    %2886 = vmatpush1.bf16.msra.mxu0 0
    %2887 = vmatprep.mubr.bf16.mxu0 0
    %2888 = vmatmul.mubr.bf16.gmra.mrb[0].mxu0 %v2802
    %v2889 = vpop.f32.mrb[0].mxu0
    %v2890 = vadd.f32 %v2806, %v2889
    %v2891 = vpop.f32.mrb[0].mxu0
    %v2892 = vpop.f32.mrb[0].mxu0
    %v2893 = vpop.f32.mrb[0].mxu0
    %2894 = vdwg.mxu0
    %2895 = vst [vmem:[#allocation3] sm:$0x3] %v2890
    // Predicated region
    $region22: #{forward.1} parent=1 // pred_check
      _
    $region23: #{forward.1} parent=1 // pred_check_branch
      %2897 = sbr.rel (0) target = $region25
    $region24: #{forward.1} parent=1 // pred_region
      %s2899 = ssub.s32 32, 32
      %2900 = vsyncadd [#allocation4], %s2899
      %s2902 = sshll.u32 [#allocation3], 4
      %s2903 = int_to_ptr.vmem [resolvable:$true] %s2902
      %2905 = dma.vmem_to_hbm [thread:$0]  %s2903, 32, %s5, [#allocation4]
    $region25: #{forward.1} parent=1 // pred_fallthru
      _
    // Predicated region
    $region26: #{forward.1} parent=1 // pred_check
      _
    $region27: #{forward.1} parent=1 // pred_check_branch
      %2907 = sbr.rel (0) target = $region29
    $region28: #{forward.1} parent=1 // pred_region
      %2908 = dma.done [#allocation4], 32
    $region29: #{forward.1} parent=1 // pred_fallthru
      _
    %2909 = vsyncpa [#allocation4], 1

</llo_original>
